<compile_context>
chip_gen: v7x
topology: tpu7x:2x2x1
jax: 0.10.0
libtpu: 0.0.40
codegen_flags: <defaults>
</compile_context>

<pallas_src>
import functools
import math

import jax
import jax.numpy as jnp
from jax import lax
from jax.experimental import pallas as pl
from jax.experimental.pallas import tpu as pltpu


# ----------------------------------------------------------------------------
# Kernel
# ----------------------------------------------------------------------------
def temporal_attention_kernel(
    x_ref, pe_ref, w_q_ref, w_kv_ref, w_fc_ref, gamma_ref, beta_ref,
    out_ref, attn_ref, k_scr, v_scr,
    *, n_head, q_tile, compute_dtype,
):
    bb, S, D = x_ref.shape
    tq = q_tile
    d_k = D // n_head
    cdt = compute_dtype
    j = pl.program_id(1)

    # --- K/V projection: once per batch block (first q-tile step), cached in
    # VMEM scratch in the matmul dtype for the remaining q-tile steps.
    @pl.when(j == 0)
    def _():
        xp = (x_ref[...] + pe_ref[...]).reshape(bb * S, D)          # f32, PE added
        kv = jnp.dot(xp.astype(cdt), w_kv_ref[...],
                     preferred_element_type=jnp.float32)            # (bb*S, 2D)
        kv = kv.astype(cdt).reshape(bb, S, 2 * D)
        k_scr[...] = kv[:, :, :D]
        v_scr[...] = kv[:, :, D:]

    # --- this step's query tile (PE-added rows double as the residual)
    row0 = pl.multiple_of(j * tq, tq)
    xq = x_ref[:, pl.ds(row0, tq), :] + pe_ref[:, pl.ds(row0, tq), :]   # (bb, tq, D)
    xq2 = xq.reshape(bb * tq, D)                                        # f32 residual
    q = jnp.dot(xq2.astype(cdt), w_q_ref[...],                          # w_q pre-scaled 1/sqrt(d_k)
                preferred_element_type=jnp.float32)
    q = q.astype(cdt).reshape(bb, tq, D)
    k = k_scr[...]
    v = v_scr[...]

    # --- scaled dot-product attention per head; head context is folded
    # straight into the output projection (no concat / lane repack).
    o = jnp.zeros((bb * tq, D), jnp.float32)
    for h in range(n_head):
        sl = slice(h * d_k, (h + 1) * d_k)
        qh = q if n_head == 1 else q[:, :, sl]
        kh = k if n_head == 1 else k[:, :, sl]
        vh = v if n_head == 1 else v[:, :, sl]
        s = jnp.einsum("bqd,bkd->bqk", qh, kh,
                       preferred_element_type=jnp.float32)          # (bb, tq, S)
        s = s - jnp.max(s, axis=-1, keepdims=True)
        e = jnp.exp(s)
        denom = jnp.sum(e, axis=-1, keepdims=True)
        inv = pl.reciprocal(denom, approx=True)                     # EUP slot
        inv = inv * (2.0 - denom * inv)                             # Newton step -> f32 accuracy
        attn_h = e * inv                                            # softmax (dropout = identity)
        attn_ref[:, h, :, :] = attn_h.astype(attn_ref.dtype)        # lane-dense (.., tq, S) store
        ctx = jnp.einsum("bqk,bkd->bqd", attn_h.astype(cdt), vh,
                         preferred_element_type=jnp.float32)        # (bb, tq, d_k)
        w_fc_h = w_fc_ref[...] if n_head == 1 else w_fc_ref[sl, :]  # sublane (row) slice
        o = o + jnp.dot(ctx.reshape(bb * tq, d_k).astype(cdt), w_fc_h,
                        preferred_element_type=jnp.float32)

    # --- residual + LayerNorm(eps=1e-6) in f32
    o = o + xq2
    mean = jnp.mean(o, axis=-1, keepdims=True)
    var = jnp.mean((o - mean) ** 2, axis=-1, keepdims=True)
    o = (o - mean) * lax.rsqrt(var + 1e-6)
    o = o * gamma_ref[...] + beta_ref[...]
    out_ref[...] = o.reshape(bb, tq, D)                             # one lane-dense store


# ----------------------------------------------------------------------------
# Sizing helpers
# ----------------------------------------------------------------------------
def _tpu_caps():
    """(physical VMEM bytes, # TensorCores) — generation-aware, safe fallback."""
    cap, cores = 64 * 1024 * 1024, 1            # conservative (v7x-sized) default
    try:
        info = pltpu.get_tpu_info()
        cap = int(getattr(info, "vmem_capacity_bytes", cap) or cap)
        for attr in ("num_cores", "tensorcore_count", "core_count", "num_tensorcores"):
            val = getattr(info, attr, None)
            if val:
                cores = int(val)
                break
    except Exception:
        pass
    return cap, cores


def _pick_q_tile(S, n_head, attn_bytes, budget_bytes):
    """Query-tile length: full S when the S^2 working set fits, else the largest
    multiple-of-8 divisor of S that bounds per-step VMEM (v7x S=1k-2k case)."""
    per_row = n_head * S * (5 * 4 + 2 * attn_bytes)   # scores/exp/attn interm. + attn out block
    tq_cap = max(8, budget_bytes // max(per_row, 1))
    if S <= tq_cap or S <= 8:
        return S
    cands = [t for t in range(8, S, 8) if S % t == 0 and t <= tq_cap]
    return max(cands) if cands else S


def _pick_batch_block(B, S, D, H, tq, cdt_bytes, attn_bytes, budget_bytes, num_cores):
    """Largest batch block fitting the VMEM budget.  Counts the in-kernel
    intermediates; double-buffer factor only on BlockSpec-managed blocks.  The
    megacore (>=2 grid steps) halving only applies on multi-TC chips."""
    f32 = 4
    # grid-invariant blocks (weights, pe, LN params); worst case double-buffered
    fixed = (3 * D * D) * cdt_bytes * 2 + (S * D + 2 * D) * f32 * 2
    # per-batch-element cost
    pipe = 2 * (S * D * f32                    # x input block
                + tq * D * f32                 # out block
                + H * tq * S * attn_bytes)     # attn block
    scratch = 2 * S * D * cdt_bytes            # K / V scratch
    interm = (S * D * (f32 + cdt_bytes)        # xp + cast
              + 2 * S * D * f32                # K|V projection result
              + tq * D * (2 * f32 + cdt_bytes) # q + residual + cast
              + 5 * tq * S * f32               # scores / exp / softmax / cast (one head live)
              + 2 * tq * D * f32)              # context + output accumulator
    per_b = pipe + scratch + interm
    bb = max(1, int((budget_bytes - fixed) // per_b))
    bb = min(B, bb)                            # VMEM is the only ceiling (no 256-row cap)
    if num_cores > 1 and B >= 2:               # only split for megacore parts (v7x)
        bb = min(bb, max(1, B // num_cores))
    while B % bb:                              # avoid ragged last block
        bb -= 1
    return bb


def positional_encoding(seq_len, d_model):
    """Sinusoidal PE matching the PyTorch PositionalEncoding buffer."""
    assert d_model % 2 == 0
    pos = jnp.arange(seq_len, dtype=jnp.float32)[:, None]
    div = jnp.exp(jnp.arange(0, d_model, 2, dtype=jnp.float32)
                  * (-(math.log(10000.0) / d_model)))
    ang = pos * div
    pe = jnp.zeros((seq_len, d_model), jnp.float32)
    pe = pe.at[:, 0::2].set(jnp.sin(ang))
    pe = pe.at[:, 1::2].set(jnp.cos(ang))
    return pe


# ----------------------------------------------------------------------------
# Wrapper
# ----------------------------------------------------------------------------
def temporal_attention(x, params, n_head=1, *, compute_dtype=jnp.bfloat16,
                       attn_dtype=None, q_block=None):
    B, S, D = x.shape
    assert D % n_head == 0
    d_k = D // n_head
    if attn_dtype is None:
        attn_dtype = compute_dtype
    cdt_bytes = jnp.dtype(compute_dtype).itemsize
    attn_bytes = jnp.dtype(attn_dtype).itemsize

    # Param prep: fold 1/sqrt(d_k) into w_qs, fuse K|V weights, pre-cast weights
    # to the matmul dtype (no per-step casts, halved weight VMEM for bf16).
    w_q = (params["w_qs"] * (1.0 / (d_k ** 0.5))).astype(compute_dtype)
    w_kv = jnp.concatenate([params["w_ks"], params["w_vs"]], axis=1).astype(compute_dtype)
    w_fc = params["w_fc"].astype(compute_dtype)
    pe = positional_encoding(S, D)[None].astype(jnp.float32)        # (1, S, D)
    gamma = params["gamma"].reshape(1, D).astype(jnp.float32)
    beta = params["beta"].reshape(1, D).astype(jnp.float32)

    cap, num_cores = _tpu_caps()
    vmem_limit = int(cap * 3 // 4)                    # ~48 MiB v7x, ~96 MiB v5e/v6e
    budget = int(vmem_limit * 0.8)                    # headroom for compiler temporaries

    tq = q_block if q_block is not None else _pick_q_tile(S, n_head, attn_bytes, budget // 4)
    assert S % tq == 0, "q_block must divide the sequence length"
    assert tq == S or tq % 8 == 0, "q_block must be S or a multiple of 8"
    bb = _pick_batch_block(B, S, D, n_head, tq, cdt_bytes, attn_bytes, budget, num_cores)

    kernel = functools.partial(temporal_attention_kernel, n_head=n_head,
                               q_tile=tq, compute_dtype=compute_dtype)

    def call(single_buffer_weights):
        def inv_spec(shape):
            # grid-invariant input (constant index_map): single-buffer when allowed
            nd = len(shape)
            imap = lambda i, j, _nd=nd: (0,) * _nd
            if single_buffer_weights:
                return pl.BlockSpec(shape, imap, pipeline_mode=pl.Buffered(1))
            return pl.BlockSpec(shape, imap)

        return pl.pallas_call(
            kernel,
            out_shape=(
                jax.ShapeDtypeStruct((B, S, D), jnp.float32),
                jax.ShapeDtypeStruct((B, n_head, S, S), attn_dtype),
            ),
            grid_spec=pltpu.PrefetchScalarGridSpec(
                num_scalar_prefetch=0,
                grid=(B // bb, S // tq),
                in_specs=[
                    pl.BlockSpec((bb, S, D), lambda i, j: (i, 0, 0)),   # x (reused across j)
                    inv_spec((1, S, D)),                                # positional encoding
                    inv_spec((D, D)),                                   # w_q (pre-scaled)
                    inv_spec((D, 2 * D)),                               # w_k | w_v fused
                    inv_spec((D, D)),                                   # w_fc
                    inv_spec((1, D)),                                   # LayerNorm gamma
                    inv_spec((1, D)),                                   # LayerNorm beta
                ],
                out_specs=[
                    pl.BlockSpec((bb, tq, D), lambda i, j: (i, j, 0)),          # output
                    pl.BlockSpec((bb, n_head, tq, S), lambda i, j: (i, 0, j, 0)),  # attn
                ],
                scratch_shapes=[
                    pltpu.VMEM((bb, S, D), compute_dtype),   # K cache for batch block
                    pltpu.VMEM((bb, S, D), compute_dtype),   # V cache for batch block
                ],
            ),
            compiler_params=pltpu.CompilerParams(
                dimension_semantics=("parallel", "arbitrary"),
                vmem_limit_bytes=vmem_limit,
            ),
        )(x, pe, w_q, w_kv, w_fc, gamma, beta)

    try:
        return call(single_buffer_weights=True)
    except Exception:
        # pl.Buffered(1) not accepted on this jax version/backend: fall back to
        # default double buffering (identical numerics).
        return call(single_buffer_weights=False)


# ----------------------------------------------------------------------------
# Pure-JAX reference (mirrors the PyTorch forward, dropout = identity)
# ----------------------------------------------------------------------------
def reference(x, p, n_head):
    B, S, D = x.shape
    d_k = D // n_head
    xp = x + positional_encoding(S, D)[None]
    q = (xp @ p["w_qs"]).reshape(B, S, n_head, d_k).transpose(0, 2, 1, 3)
    k = (xp @ p["w_ks"]).reshape(B, S, n_head, d_k).transpose(0, 2, 1, 3)
    v = (xp @ p["w_vs"]).reshape(B, S, n_head, d_k).transpose(0, 2, 1, 3)
    attn = jax.nn.softmax(
        jnp.einsum("bhqd,bhkd->bhqk", q / (d_k ** 0.5), k), axis=-1)
    o = jnp.einsum("bhqk,bhkd->bhqd", attn, v)
    o = o.transpose(0, 2, 1, 3).reshape(B, S, D)
    o = o @ p["w_fc"] + xp
    mean = o.mean(-1, keepdims=True)
    var = ((o - mean) ** 2).mean(-1, keepdims=True)
    o = (o - mean) / jnp.sqrt(var + 1e-6) * p["gamma"] + p["beta"]
    return o, attn


# ----------------------------------------------------------------------------
# Smoke test
# ----------------------------------------------------------------------------
if __name__ == "__main__":
    B, S, D = 2, 16, 32

    key = jax.random.PRNGKey(0)
    ks = jax.random.split(key, 7)
    x = jax.random.normal(ks[0], (B, S, D), jnp.float32)
    params = {
        "w_qs": 0.1 * jax.random.normal(ks[1], (D, D), jnp.float32),
        "w_ks": 0.1 * jax.random.normal(ks[2], (D, D), jnp.float32),
        "w_vs": 0.1 * jax.random.normal(ks[3], (D, D), jnp.float32),
        "w_fc": 0.1 * jax.random.normal(ks[4], (D, D), jnp.float32),
        "gamma": jnp.ones((D,), jnp.float32)
                 + 0.05 * jax.random.normal(ks[5], (D,), jnp.float32),
        "beta": 0.05 * jax.random.normal(ks[6], (D,), jnp.float32),
    }

    configs = [
        # (n_head, compute_dtype, attn_dtype, q_block, tolerance)
        (1, jnp.float32,  jnp.float32,  None, 1e-4),   # module default, exact f32 path
        (2, jnp.float32,  jnp.float32,  8,    1e-4),   # multi-head + q-tiled grid path
        (1, jnp.bfloat16, jnp.bfloat16, None, 2e-2),   # production dtype config (bf16 MXU)
    ]
    for n_head, cdt, adt, q_block, tol in configs:
        out, attn = temporal_attention(x, params, n_head=n_head,
                                       compute_dtype=cdt, attn_dtype=adt,
                                       q_block=q_block)
        jax.block_until_ready((out, attn))

        out_exp, attn_exp = reference(x, params, n_head)
        assert out.shape == (B, S, D) and attn.shape == (B, n_head, S, S)
        assert jnp.allclose(out, out_exp, atol=tol, rtol=tol), \
            f"output mismatch (n_head={n_head}, dtype={cdt.__name__})"
        assert jnp.allclose(attn.astype(jnp.float32), attn_exp, atol=tol, rtol=tol), \
            f"attn mismatch (n_head={n_head}, dtype={cdt.__name__})"

    print("KERNEL_OK")
</pallas_src>

<mosaic_0001>
module attributes {stable_mosaic.version = 11 : i64} {
  func.func @temporal_attention_kernel(%arg0: i32, %arg1: i32, %arg2: memref<2x16x32xf32, #tpu.memory_space<vmem>>, %arg3: memref<1x16x32xf32, #tpu.memory_space<vmem>>, %arg4: memref<32x32xf32, #tpu.memory_space<vmem>>, %arg5: memref<32x64xf32, #tpu.memory_space<vmem>>, %arg6: memref<32x32xf32, #tpu.memory_space<vmem>>, %arg7: memref<1x32xf32, #tpu.memory_space<vmem>>, %arg8: memref<1x32xf32, #tpu.memory_space<vmem>>, %arg9: memref<2x16x32xf32, #tpu.memory_space<vmem>>, %arg10: memref<2x1x16x16xf32, #tpu.memory_space<vmem>>, %arg11: memref<2x16x32xf32, #tpu.memory_space<vmem>>, %arg12: memref<2x16x32xf32, #tpu.memory_space<vmem>>) attributes {dimension_semantics = [#tpu.dimension_semantics<parallel>, #tpu.dimension_semantics<arbitrary>], iteration_bounds = array<i64: 1, 1>, scalar_prefetch = 0 : i64, scratch_operands = 2 : i64, tpu.core_type = #tpu.core_type<tc>, window_params = [{transform_indices = @transform_0, window_bounds = array<i64: 2, 16, 32>}, {pipeline_mode = #tpu.pipeline_mode<synchronous>, transform_indices = @transform_1, window_bounds = array<i64: 1, 16, 32>}, {pipeline_mode = #tpu.pipeline_mode<synchronous>, transform_indices = @transform_2, window_bounds = array<i64: 32, 32>}, {pipeline_mode = #tpu.pipeline_mode<synchronous>, transform_indices = @transform_3, window_bounds = array<i64: 32, 64>}, {pipeline_mode = #tpu.pipeline_mode<synchronous>, transform_indices = @transform_4, window_bounds = array<i64: 32, 32>}, {pipeline_mode = #tpu.pipeline_mode<synchronous>, transform_indices = @transform_5, window_bounds = array<i64: 1, 32>}, {pipeline_mode = #tpu.pipeline_mode<synchronous>, transform_indices = @transform_6, window_bounds = array<i64: 1, 32>}, {transform_indices = @transform_7, window_bounds = array<i64: 2, 16, 32>}, {transform_indices = @transform_8, window_bounds = array<i64: 2, 1, 16, 16>}]} {
    %c0_i32 = arith.constant 0 : i32
    %0 = arith.cmpi eq, %arg1, %c0_i32 : i32
    %1 = arith.extui %0 : i1 to i32
    %c0_i32_0 = arith.constant 0 : i32
    %2 = arith.cmpi ne, %1, %c0_i32_0 : i32
    scf.if %2 {
      %c0_37 = arith.constant 0 : index
      %c0_38 = arith.constant 0 : index
      %c0_39 = arith.constant 0 : index
      %68 = vector.load %arg2[%c0_37, %c0_38, %c0_39] : memref<2x16x32xf32, #tpu.memory_space<vmem>>, vector<2x16x32xf32>
      %c0_40 = arith.constant 0 : index
      %c0_41 = arith.constant 0 : index
      %c0_42 = arith.constant 0 : index
      %69 = vector.load %arg3[%c0_40, %c0_41, %c0_42] : memref<1x16x32xf32, #tpu.memory_space<vmem>>, vector<1x16x32xf32>
      %70 = vector.broadcast %69 : vector<1x16x32xf32> to vector<2x16x32xf32>
      %71 = arith.addf %68, %70 : vector<2x16x32xf32>
      %72 = vector.shape_cast %71 : vector<2x16x32xf32> to vector<32x32xf32>
      %c0_43 = arith.constant 0 : index
      %c0_44 = arith.constant 0 : index
      %73 = vector.load %arg5[%c0_43, %c0_44] : memref<32x64xf32, #tpu.memory_space<vmem>>, vector<32x64xf32>
      %cst_45 = arith.constant dense<0.000000e+00> : vector<32x64xf32>
      %74 = tpu.matmul %72, %73, %cst_45 {dimension_numbers = #tpu.dot_dimension_numbers<[1], [0], [0], [1], [0, 0, 1, 1], [], []>} : vector<32x32xf32>, vector<32x64xf32>, vector<32x64xf32> -> vector<32x64xf32>
      %75 = vector.shape_cast %74 : vector<32x64xf32> to vector<2x16x64xf32>
      %76 = vector.extract_strided_slice %75 {offsets = [0, 0, 0], sizes = [2, 16, 32], strides = [1, 1, 1]} : vector<2x16x64xf32> to vector<2x16x32xf32>
      %c0_46 = arith.constant 0 : index
      %c0_47 = arith.constant 0 : index
      %c0_48 = arith.constant 0 : index
      %77 = vector.load %arg11[%c0_46, %c0_47, %c0_48] : memref<2x16x32xf32, #tpu.memory_space<vmem>>, vector<2x16x32xf32>
      tpu.vector_store %arg11[%c0_46, %c0_47, %c0_48], %76 {strides = array<i32>} : memref<2x16x32xf32, #tpu.memory_space<vmem>>, vector<2x16x32xf32>,
      %78 = vector.extract_strided_slice %75 {offsets = [0, 0, 32], sizes = [2, 16, 32], strides = [1, 1, 1]} : vector<2x16x64xf32> to vector<2x16x32xf32>
      %c0_49 = arith.constant 0 : index
      %c0_50 = arith.constant 0 : index
      %c0_51 = arith.constant 0 : index
      %79 = vector.load %arg12[%c0_49, %c0_50, %c0_51] : memref<2x16x32xf32, #tpu.memory_space<vmem>>, vector<2x16x32xf32>
      tpu.vector_store %arg12[%c0_49, %c0_50, %c0_51], %78 {strides = array<i32>} : memref<2x16x32xf32, #tpu.memory_space<vmem>>, vector<2x16x32xf32>,
    } else {
    }
    %c16_i32 = arith.constant 16 : i32
    %3 = arith.muli %arg1, %c16_i32 : i32
    %4 = tpu.assume_multiple %3, 16 : i32
    %c0 = arith.constant 0 : index
    %5 = arith.index_cast %4 : i32 to index
    %c0_1 = arith.constant 0 : index
    %6 = vector.load %arg2[%c0, %5, %c0_1] : memref<2x16x32xf32, #tpu.memory_space<vmem>>, vector<2x16x32xf32>
    %c0_2 = arith.constant 0 : index
    %7 = arith.index_cast %4 : i32 to index
    %c0_3 = arith.constant 0 : index
    %8 = vector.load %arg3[%c0_2, %7, %c0_3] : memref<1x16x32xf32, #tpu.memory_space<vmem>>, vector<1x16x32xf32>
    %9 = vector.broadcast %8 : vector<1x16x32xf32> to vector<2x16x32xf32>
    %10 = arith.addf %6, %9 : vector<2x16x32xf32>
    %11 = vector.shape_cast %10 : vector<2x16x32xf32> to vector<32x32xf32>
    %c0_4 = arith.constant 0 : index
    %c0_5 = arith.constant 0 : index
    %12 = vector.load %arg4[%c0_4, %c0_5] : memref<32x32xf32, #tpu.memory_space<vmem>>, vector<32x32xf32>
    %cst = arith.constant dense<0.000000e+00> : vector<32x32xf32>
    %13 = tpu.matmul %11, %12, %cst {dimension_numbers = #tpu.dot_dimension_numbers<[1], [0], [0], [1], [0, 0, 1, 1], [], []>} : vector<32x32xf32>, vector<32x32xf32>, vector<32x32xf32> -> vector<32x32xf32>
    %14 = vector.shape_cast %13 : vector<32x32xf32> to vector<2x16x32xf32>
    %c0_6 = arith.constant 0 : index
    %c0_7 = arith.constant 0 : index
    %c0_8 = arith.constant 0 : index
    %15 = vector.load %arg11[%c0_6, %c0_7, %c0_8] : memref<2x16x32xf32, #tpu.memory_space<vmem>>, vector<2x16x32xf32>
    %c0_9 = arith.constant 0 : index
    %c0_10 = arith.constant 0 : index
    %c0_11 = arith.constant 0 : index
    %16 = vector.load %arg12[%c0_9, %c0_10, %c0_11] : memref<2x16x32xf32, #tpu.memory_space<vmem>>, vector<2x16x32xf32>
    %cst_12 = arith.constant 0.000000e+00 : f32
    %17 = vector.broadcast %cst_12 : f32 to vector<32x32xf32>
    "tpu.trace_start"() <{level = 10 : i32, message = "bqd,bkd->bqk"}> : () -> ()
    %cst_13 = arith.constant dense<0.000000e+00> : vector<2x16x16xf32>
    %18 = tpu.matmul %14, %15, %cst_13 {dimension_numbers = #tpu.dot_dimension_numbers<[2], [2], [1], [1], [0, 0, 0, 1, 1, 1], [0], [0]>} : vector<2x16x32xf32>, vector<2x16x32xf32>, vector<2x16x16xf32> -> vector<2x16x16xf32>
    "tpu.trace_stop"() : () -> ()
    %cst_14 = arith.constant dense<0xFF800000> : vector<2x16xf32>
    %19 = vector.multi_reduction <maximumf>, %18, %cst_14 [2] : vector<2x16x16xf32> to vector<2x16xf32>
    %20 = vector.shape_cast %19 : vector<2x16xf32> to vector<2x16x1xf32>
    %21 = vector.broadcast %20 : vector<2x16x1xf32> to vector<2x16x16xf32>
    %22 = arith.subf %18, %21 : vector<2x16x16xf32>
    %23 = math.exp %22 : vector<2x16x16xf32>
    %cst_15 = arith.constant dense<0.000000e+00> : vector<2x16xf32>
    %24 = vector.multi_reduction <add>, %23, %cst_15 [2] : vector<2x16x16xf32> to vector<2x16xf32>
    %25 = vector.shape_cast %24 : vector<2x16xf32> to vector<2x16x1xf32>
    %26 = tpu.reciprocal %25 {approx = true} : vector<2x16x1xf32> -> vector<2x16x1xf32>
    %27 = arith.mulf %25, %26 : vector<2x16x1xf32>
    %cst_16 = arith.constant 2.000000e+00 : f32
    %28 = vector.broadcast %cst_16 : f32 to vector<2x16x1xf32>
    %29 = arith.subf %28, %27 : vector<2x16x1xf32>
    %30 = arith.mulf %26, %29 : vector<2x16x1xf32>
    %31 = vector.broadcast %30 : vector<2x16x1xf32> to vector<2x16x16xf32>
    %32 = arith.mulf %23, %31 : vector<2x16x16xf32>
    %c0_17 = arith.constant 0 : index
    %c0_18 = arith.constant 0 : index
    %c0_19 = arith.constant 0 : index
    %c0_20 = arith.constant 0 : index
    %33 = vector.load %arg10[%c0_17, %c0_18, %c0_19, %c0_20] : memref<2x1x16x16xf32, #tpu.memory_space<vmem>>, vector<2x1x16x16xf32>
    %34 = vector.shape_cast %33 : vector<2x1x16x16xf32> to vector<2x16x16xf32>
    %35 = vector.shape_cast %32 : vector<2x16x16xf32> to vector<2x1x16x16xf32>
    tpu.vector_store %arg10[%c0_17, %c0_18, %c0_19, %c0_20], %35 {strides = array<i32>} : memref<2x1x16x16xf32, #tpu.memory_space<vmem>>, vector<2x1x16x16xf32>,
    "tpu.trace_start"() <{level = 10 : i32, message = "bqk,bkd->bqd"}> : () -> ()
    %cst_21 = arith.constant dense<0.000000e+00> : vector<2x16x32xf32>
    %36 = tpu.matmul %32, %16, %cst_21 {dimension_numbers = #tpu.dot_dimension_numbers<[2], [1], [1], [2], [0, 0, 0, 1, 1, 2], [0], [0]>} : vector<2x16x16xf32>, vector<2x16x32xf32>, vector<2x16x32xf32> -> vector<2x16x32xf32>
    "tpu.trace_stop"() : () -> ()
    %c0_22 = arith.constant 0 : index
    %c0_23 = arith.constant 0 : index
    %37 = vector.load %arg6[%c0_22, %c0_23] : memref<32x32xf32, #tpu.memory_space<vmem>>, vector<32x32xf32>
    %38 = vector.shape_cast %36 : vector<2x16x32xf32> to vector<32x32xf32>
    %cst_24 = arith.constant dense<0.000000e+00> : vector<32x32xf32>
    %39 = tpu.matmul %38, %37, %cst_24 {dimension_numbers = #tpu.dot_dimension_numbers<[1], [0], [0], [1], [0, 0, 1, 1], [], []>} : vector<32x32xf32>, vector<32x32xf32>, vector<32x32xf32> -> vector<32x32xf32>
    %40 = arith.addf %17, %39 : vector<32x32xf32>
    %41 = arith.addf %40, %11 : vector<32x32xf32>
    %cst_25 = arith.constant dense<0.000000e+00> : vector<32xf32>
    %42 = vector.multi_reduction <add>, %41, %cst_25 [1] : vector<32x32xf32> to vector<32xf32>
    %43 = vector.shape_cast %42 : vector<32xf32> to vector<32x1xf32>
    %cst_26 = arith.constant 3.200000e+01 : f32
    %44 = vector.broadcast %cst_26 : f32 to vector<32x1xf32>
    %45 = arith.divf %43, %44 : vector<32x1xf32>
    %46 = vector.broadcast %45 : vector<32x1xf32> to vector<32x32xf32>
    %47 = arith.subf %41, %46 : vector<32x32xf32>
    %48 = arith.mulf %47, %47 : vector<32x32xf32>
    %cst_27 = arith.constant dense<0.000000e+00> : vector<32xf32>
    %49 = vector.multi_reduction <add>, %48, %cst_27 [1] : vector<32x32xf32> to vector<32xf32>
    %50 = vector.shape_cast %49 : vector<32xf32> to vector<32x1xf32>
    %cst_28 = arith.constant 3.200000e+01 : f32
    %51 = vector.broadcast %cst_28 : f32 to vector<32x1xf32>
    %52 = arith.divf %50, %51 : vector<32x1xf32>
    %53 = vector.broadcast %45 : vector<32x1xf32> to vector<32x32xf32>
    %54 = arith.subf %41, %53 : vector<32x32xf32>
    %cst_29 = arith.constant 9.99999997E-7 : f32
    %55 = vector.broadcast %cst_29 : f32 to vector<32x1xf32>
    %56 = arith.addf %52, %55 : vector<32x1xf32>
    %57 = math.rsqrt %56 : vector<32x1xf32>
    %58 = vector.broadcast %57 : vector<32x1xf32> to vector<32x32xf32>
    %59 = arith.mulf %54, %58 : vector<32x32xf32>
    %c0_30 = arith.constant 0 : index
    %c0_31 = arith.constant 0 : index
    %60 = vector.load %arg7[%c0_30, %c0_31] : memref<1x32xf32, #tpu.memory_space<vmem>>, vector<1x32xf32>
    %61 = vector.broadcast %60 : vector<1x32xf32> to vector<32x32xf32>
    %62 = arith.mulf %59, %61 : vector<32x32xf32>
    %c0_32 = arith.constant 0 : index
    %c0_33 = arith.constant 0 : index
    %63 = vector.load %arg8[%c0_32, %c0_33] : memref<1x32xf32, #tpu.memory_space<vmem>>, vector<1x32xf32>
    %64 = vector.broadcast %63 : vector<1x32xf32> to vector<32x32xf32>
    %65 = arith.addf %62, %64 : vector<32x32xf32>
    %66 = vector.shape_cast %65 : vector<32x32xf32> to vector<2x16x32xf32>
    %c0_34 = arith.constant 0 : index
    %c0_35 = arith.constant 0 : index
    %c0_36 = arith.constant 0 : index
    %67 = vector.load %arg9[%c0_34, %c0_35, %c0_36] : memref<2x16x32xf32, #tpu.memory_space<vmem>>, vector<2x16x32xf32>
    tpu.vector_store %arg9[%c0_34, %c0_35, %c0_36], %66 {strides = array<i32>} : memref<2x16x32xf32, #tpu.memory_space<vmem>>, vector<2x16x32xf32>,
    return
  }
  func.func @transform_0(%arg0: i32, %arg1: i32) -> (i32, i32, i32) {
    %c0_i32 = arith.constant 0 : i32
    %c0_i32_0 = arith.constant 0 : i32
    %c0_i32_1 = arith.constant 0 : i32
    return %arg0, %c0_i32, %c0_i32_0 : i32, i32, i32
  }
  func.func @transform_1(%arg0: i32, %arg1: i32) -> (i32, i32, i32) {
    %c0_i32 = arith.constant 0 : i32
    %c0_i32_0 = arith.constant 0 : i32
    %c0_i32_1 = arith.constant 0 : i32
    %c0_i32_2 = arith.constant 0 : i32
    return %c0_i32, %c0_i32_0, %c0_i32_1 : i32, i32, i32
  }
  func.func @transform_2(%arg0: i32, %arg1: i32) -> (i32, i32) {
    %c0_i32 = arith.constant 0 : i32
    %c0_i32_0 = arith.constant 0 : i32
    %c0_i32_1 = arith.constant 0 : i32
    return %c0_i32, %c0_i32_0 : i32, i32
  }
  func.func @transform_3(%arg0: i32, %arg1: i32) -> (i32, i32) {
    %c0_i32 = arith.constant 0 : i32
    %c0_i32_0 = arith.constant 0 : i32
    %c0_i32_1 = arith.constant 0 : i32
    return %c0_i32, %c0_i32_0 : i32, i32
  }
  func.func @transform_4(%arg0: i32, %arg1: i32) -> (i32, i32) {
    %c0_i32 = arith.constant 0 : i32
    %c0_i32_0 = arith.constant 0 : i32
    %c0_i32_1 = arith.constant 0 : i32
    return %c0_i32, %c0_i32_0 : i32, i32
  }
  func.func @transform_5(%arg0: i32, %arg1: i32) -> (i32, i32) {
    %c0_i32 = arith.constant 0 : i32
    %c0_i32_0 = arith.constant 0 : i32
    %c0_i32_1 = arith.constant 0 : i32
    return %c0_i32, %c0_i32_0 : i32, i32
  }
  func.func @transform_6(%arg0: i32, %arg1: i32) -> (i32, i32) {
    %c0_i32 = arith.constant 0 : i32
    %c0_i32_0 = arith.constant 0 : i32
    %c0_i32_1 = arith.constant 0 : i32
    return %c0_i32, %c0_i32_0 : i32, i32
  }
  func.func @transform_7(%arg0: i32, %arg1: i32) -> (i32, i32, i32) {
    %c0_i32 = arith.constant 0 : i32
    %c0_i32_0 = arith.constant 0 : i32
    return %arg0, %arg1, %c0_i32 : i32, i32, i32
  }
  func.func @transform_8(%arg0: i32, %arg1: i32) -> (i32, i32, i32, i32) {
    %c0_i32 = arith.constant 0 : i32
    %c0_i32_0 = arith.constant 0 : i32
    %c0_i32_1 = arith.constant 0 : i32
    return %arg0, %c0_i32, %arg1, %c0_i32_0 : i32, i32, i32, i32
  }
}

module attributes {stable_mosaic.version = 11 : i64} {
  func.func @temporal_attention_kernel(%arg0: i32, %arg1: i32, %arg2: memref<2x16x32xf32, #tpu.memory_space<vmem>>, %arg3: memref<1x16x32xf32, #tpu.memory_space<vmem>>, %arg4: memref<32x32xf32, #tpu.memory_space<vmem>>, %arg5: memref<32x64xf32, #tpu.memory_space<vmem>>, %arg6: memref<32x32xf32, #tpu.memory_space<vmem>>, %arg7: memref<1x32xf32, #tpu.memory_space<vmem>>, %arg8: memref<1x32xf32, #tpu.memory_space<vmem>>, %arg9: memref<2x16x32xf32, #tpu.memory_space<vmem>>, %arg10: memref<2x1x16x16xf32, #tpu.memory_space<vmem>>, %arg11: memref<2x16x32xf32, #tpu.memory_space<vmem>>, %arg12: memref<2x16x32xf32, #tpu.memory_space<vmem>>) attributes {dimension_semantics = [#tpu.dimension_semantics<parallel>, #tpu.dimension_semantics<arbitrary>], iteration_bounds = array<i64: 1, 1>, scalar_prefetch = 0 : i64, scratch_operands = 2 : i64, tpu.core_type = #tpu.core_type<tc>, window_params = [{transform_indices = @transform_0, window_bounds = array<i64: 2, 16, 32>}, {pipeline_mode = #tpu.pipeline_mode<synchronous>, transform_indices = @transform_1, window_bounds = array<i64: 1, 16, 32>}, {pipeline_mode = #tpu.pipeline_mode<synchronous>, transform_indices = @transform_2, window_bounds = array<i64: 32, 32>}, {pipeline_mode = #tpu.pipeline_mode<synchronous>, transform_indices = @transform_3, window_bounds = array<i64: 32, 64>}, {pipeline_mode = #tpu.pipeline_mode<synchronous>, transform_indices = @transform_4, window_bounds = array<i64: 32, 32>}, {pipeline_mode = #tpu.pipeline_mode<synchronous>, transform_indices = @transform_5, window_bounds = array<i64: 1, 32>}, {pipeline_mode = #tpu.pipeline_mode<synchronous>, transform_indices = @transform_6, window_bounds = array<i64: 1, 32>}, {transform_indices = @transform_7, window_bounds = array<i64: 2, 16, 32>}, {transform_indices = @transform_8, window_bounds = array<i64: 2, 1, 16, 16>}]} {
    %c0_i32 = arith.constant 0 : i32
    %0 = arith.cmpi eq, %arg1, %c0_i32 : i32
    %1 = arith.extui %0 : i1 to i32
    %c0_i32_0 = arith.constant 0 : i32
    %2 = arith.cmpi ne, %1, %c0_i32_0 : i32
    scf.if %2 {
      %c0_37 = arith.constant 0 : index
      %c0_38 = arith.constant 0 : index
      %c0_39 = arith.constant 0 : index
      %68 = vector.load %arg2[%c0_37, %c0_38, %c0_39] : memref<2x16x32xf32, #tpu.memory_space<vmem>>, vector<2x16x32xf32>
      %c0_40 = arith.constant 0 : index
      %c0_41 = arith.constant 0 : index
      %c0_42 = arith.constant 0 : index
      %69 = vector.load %arg3[%c0_40, %c0_41, %c0_42] : memref<1x16x32xf32, #tpu.memory_space<vmem>>, vector<1x16x32xf32>
      %70 = vector.broadcast %69 : vector<1x16x32xf32> to vector<2x16x32xf32>
      %71 = arith.addf %68, %70 : vector<2x16x32xf32>
      %72 = vector.shape_cast %71 : vector<2x16x32xf32> to vector<32x32xf32>
      %c0_43 = arith.constant 0 : index
      %c0_44 = arith.constant 0 : index
      %73 = vector.load %arg5[%c0_43, %c0_44] : memref<32x64xf32, #tpu.memory_space<vmem>>, vector<32x64xf32>
      %cst_45 = arith.constant dense<0.000000e+00> : vector<32x64xf32>
      %74 = tpu.matmul %72, %73, %cst_45 {dimension_numbers = #tpu.dot_dimension_numbers<[1], [0], [0], [1], [0, 0, 1, 1], [], []>} : vector<32x32xf32>, vector<32x64xf32>, vector<32x64xf32> -> vector<32x64xf32>
      %75 = vector.shape_cast %74 : vector<32x64xf32> to vector<2x16x64xf32>
      %76 = vector.extract_strided_slice %75 {offsets = [0, 0, 0], sizes = [2, 16, 32], strides = [1, 1, 1]} : vector<2x16x64xf32> to vector<2x16x32xf32>
      %c0_46 = arith.constant 0 : index
      %c0_47 = arith.constant 0 : index
      %c0_48 = arith.constant 0 : index
      %77 = vector.load %arg11[%c0_46, %c0_47, %c0_48] : memref<2x16x32xf32, #tpu.memory_space<vmem>>, vector<2x16x32xf32>
      tpu.vector_store %arg11[%c0_46, %c0_47, %c0_48], %76 {strides = array<i32>} : memref<2x16x32xf32, #tpu.memory_space<vmem>>, vector<2x16x32xf32>,
      %78 = vector.extract_strided_slice %75 {offsets = [0, 0, 32], sizes = [2, 16, 32], strides = [1, 1, 1]} : vector<2x16x64xf32> to vector<2x16x32xf32>
      %c0_49 = arith.constant 0 : index
      %c0_50 = arith.constant 0 : index
      %c0_51 = arith.constant 0 : index
      %79 = vector.load %arg12[%c0_49, %c0_50, %c0_51] : memref<2x16x32xf32, #tpu.memory_space<vmem>>, vector<2x16x32xf32>
      tpu.vector_store %arg12[%c0_49, %c0_50, %c0_51], %78 {strides = array<i32>} : memref<2x16x32xf32, #tpu.memory_space<vmem>>, vector<2x16x32xf32>,
    } else {
    }
    %c16_i32 = arith.constant 16 : i32
    %3 = arith.muli %arg1, %c16_i32 : i32
    %4 = tpu.assume_multiple %3, 16 : i32
    %c0 = arith.constant 0 : index
    %5 = arith.index_cast %4 : i32 to index
    %c0_1 = arith.constant 0 : index
    %6 = vector.load %arg2[%c0, %5, %c0_1] : memref<2x16x32xf32, #tpu.memory_space<vmem>>, vector<2x16x32xf32>
    %c0_2 = arith.constant 0 : index
    %7 = arith.index_cast %4 : i32 to index
    %c0_3 = arith.constant 0 : index
    %8 = vector.load %arg3[%c0_2, %7, %c0_3] : memref<1x16x32xf32, #tpu.memory_space<vmem>>, vector<1x16x32xf32>
    %9 = vector.broadcast %8 : vector<1x16x32xf32> to vector<2x16x32xf32>
    %10 = arith.addf %6, %9 : vector<2x16x32xf32>
    %11 = vector.shape_cast %10 : vector<2x16x32xf32> to vector<32x32xf32>
    %c0_4 = arith.constant 0 : index
    %c0_5 = arith.constant 0 : index
    %12 = vector.load %arg4[%c0_4, %c0_5] : memref<32x32xf32, #tpu.memory_space<vmem>>, vector<32x32xf32>
    %cst = arith.constant dense<0.000000e+00> : vector<32x32xf32>
    %13 = tpu.matmul %11, %12, %cst {dimension_numbers = #tpu.dot_dimension_numbers<[1], [0], [0], [1], [0, 0, 1, 1], [], []>} : vector<32x32xf32>, vector<32x32xf32>, vector<32x32xf32> -> vector<32x32xf32>
    %14 = vector.shape_cast %13 : vector<32x32xf32> to vector<2x16x32xf32>
    %c0_6 = arith.constant 0 : index
    %c0_7 = arith.constant 0 : index
    %c0_8 = arith.constant 0 : index
    %15 = vector.load %arg11[%c0_6, %c0_7, %c0_8] : memref<2x16x32xf32, #tpu.memory_space<vmem>>, vector<2x16x32xf32>
    %c0_9 = arith.constant 0 : index
    %c0_10 = arith.constant 0 : index
    %c0_11 = arith.constant 0 : index
    %16 = vector.load %arg12[%c0_9, %c0_10, %c0_11] : memref<2x16x32xf32, #tpu.memory_space<vmem>>, vector<2x16x32xf32>
    %cst_12 = arith.constant 0.000000e+00 : f32
    %17 = vector.broadcast %cst_12 : f32 to vector<32x32xf32>
    "tpu.trace_start"() <{level = 10 : i32, message = "bqd,bkd->bqk"}> : () -> ()
    %cst_13 = arith.constant dense<0.000000e+00> : vector<2x16x16xf32>
    %18 = tpu.matmul %14, %15, %cst_13 {dimension_numbers = #tpu.dot_dimension_numbers<[2], [2], [1], [1], [0, 0, 0, 1, 1, 1], [0], [0]>} : vector<2x16x32xf32>, vector<2x16x32xf32>, vector<2x16x16xf32> -> vector<2x16x16xf32>
    "tpu.trace_stop"() : () -> ()
    %cst_14 = arith.constant dense<0xFF800000> : vector<2x16xf32>
    %19 = vector.multi_reduction <maximumf>, %18, %cst_14 [2] : vector<2x16x16xf32> to vector<2x16xf32>
    %20 = vector.shape_cast %19 : vector<2x16xf32> to vector<2x16x1xf32>
    %21 = vector.broadcast %20 : vector<2x16x1xf32> to vector<2x16x16xf32>
    %22 = arith.subf %18, %21 : vector<2x16x16xf32>
    %23 = math.exp %22 : vector<2x16x16xf32>
    %cst_15 = arith.constant dense<0.000000e+00> : vector<2x16xf32>
    %24 = vector.multi_reduction <add>, %23, %cst_15 [2] : vector<2x16x16xf32> to vector<2x16xf32>
    %25 = vector.shape_cast %24 : vector<2x16xf32> to vector<2x16x1xf32>
    %26 = tpu.reciprocal %25 {approx = true} : vector<2x16x1xf32> -> vector<2x16x1xf32>
    %27 = arith.mulf %25, %26 : vector<2x16x1xf32>
    %cst_16 = arith.constant 2.000000e+00 : f32
    %28 = vector.broadcast %cst_16 : f32 to vector<2x16x1xf32>
    %29 = arith.subf %28, %27 : vector<2x16x1xf32>
    %30 = arith.mulf %26, %29 : vector<2x16x1xf32>
    %31 = vector.broadcast %30 : vector<2x16x1xf32> to vector<2x16x16xf32>
    %32 = arith.mulf %23, %31 : vector<2x16x16xf32>
    %c0_17 = arith.constant 0 : index
    %c0_18 = arith.constant 0 : index
    %c0_19 = arith.constant 0 : index
    %c0_20 = arith.constant 0 : index
    %33 = vector.load %arg10[%c0_17, %c0_18, %c0_19, %c0_20] : memref<2x1x16x16xf32, #tpu.memory_space<vmem>>, vector<2x1x16x16xf32>
    %34 = vector.shape_cast %33 : vector<2x1x16x16xf32> to vector<2x16x16xf32>
    %35 = vector.shape_cast %32 : vector<2x16x16xf32> to vector<2x1x16x16xf32>
    tpu.vector_store %arg10[%c0_17, %c0_18, %c0_19, %c0_20], %35 {strides = array<i32>} : memref<2x1x16x16xf32, #tpu.memory_space<vmem>>, vector<2x1x16x16xf32>,
    "tpu.trace_start"() <{level = 10 : i32, message = "bqk,bkd->bqd"}> : () -> ()
    %cst_21 = arith.constant dense<0.000000e+00> : vector<2x16x32xf32>
    %36 = tpu.matmul %32, %16, %cst_21 {dimension_numbers = #tpu.dot_dimension_numbers<[2], [1], [1], [2], [0, 0, 0, 1, 1, 2], [0], [0]>} : vector<2x16x16xf32>, vector<2x16x32xf32>, vector<2x16x32xf32> -> vector<2x16x32xf32>
    "tpu.trace_stop"() : () -> ()
    %c0_22 = arith.constant 0 : index
    %c0_23 = arith.constant 0 : index
    %37 = vector.load %arg6[%c0_22, %c0_23] : memref<32x32xf32, #tpu.memory_space<vmem>>, vector<32x32xf32>
    %38 = vector.shape_cast %36 : vector<2x16x32xf32> to vector<32x32xf32>
    %cst_24 = arith.constant dense<0.000000e+00> : vector<32x32xf32>
    %39 = tpu.matmul %38, %37, %cst_24 {dimension_numbers = #tpu.dot_dimension_numbers<[1], [0], [0], [1], [0, 0, 1, 1], [], []>} : vector<32x32xf32>, vector<32x32xf32>, vector<32x32xf32> -> vector<32x32xf32>
    %40 = arith.addf %17, %39 : vector<32x32xf32>
    %41 = arith.addf %40, %11 : vector<32x32xf32>
    %cst_25 = arith.constant dense<0.000000e+00> : vector<32xf32>
    %42 = vector.multi_reduction <add>, %41, %cst_25 [1] : vector<32x32xf32> to vector<32xf32>
    %43 = vector.shape_cast %42 : vector<32xf32> to vector<32x1xf32>
    %cst_26 = arith.constant 3.200000e+01 : f32
    %44 = vector.broadcast %cst_26 : f32 to vector<32x1xf32>
    %45 = arith.divf %43, %44 : vector<32x1xf32>
    %46 = vector.broadcast %45 : vector<32x1xf32> to vector<32x32xf32>
    %47 = arith.subf %41, %46 : vector<32x32xf32>
    %48 = arith.mulf %47, %47 : vector<32x32xf32>
    %cst_27 = arith.constant dense<0.000000e+00> : vector<32xf32>
    %49 = vector.multi_reduction <add>, %48, %cst_27 [1] : vector<32x32xf32> to vector<32xf32>
    %50 = vector.shape_cast %49 : vector<32xf32> to vector<32x1xf32>
    %cst_28 = arith.constant 3.200000e+01 : f32
    %51 = vector.broadcast %cst_28 : f32 to vector<32x1xf32>
    %52 = arith.divf %50, %51 : vector<32x1xf32>
    %53 = vector.broadcast %45 : vector<32x1xf32> to vector<32x32xf32>
    %54 = arith.subf %41, %53 : vector<32x32xf32>
    %cst_29 = arith.constant 9.99999997E-7 : f32
    %55 = vector.broadcast %cst_29 : f32 to vector<32x1xf32>
    %56 = arith.addf %52, %55 : vector<32x1xf32>
    %57 = math.rsqrt %56 : vector<32x1xf32>
    %58 = vector.broadcast %57 : vector<32x1xf32> to vector<32x32xf32>
    %59 = arith.mulf %54, %58 : vector<32x32xf32>
    %c0_30 = arith.constant 0 : index
    %c0_31 = arith.constant 0 : index
    %60 = vector.load %arg7[%c0_30, %c0_31] : memref<1x32xf32, #tpu.memory_space<vmem>>, vector<1x32xf32>
    %61 = vector.broadcast %60 : vector<1x32xf32> to vector<32x32xf32>
    %62 = arith.mulf %59, %61 : vector<32x32xf32>
    %c0_32 = arith.constant 0 : index
    %c0_33 = arith.constant 0 : index
    %63 = vector.load %arg8[%c0_32, %c0_33] : memref<1x32xf32, #tpu.memory_space<vmem>>, vector<1x32xf32>
    %64 = vector.broadcast %63 : vector<1x32xf32> to vector<32x32xf32>
    %65 = arith.addf %62, %64 : vector<32x32xf32>
    %66 = vector.shape_cast %65 : vector<32x32xf32> to vector<2x16x32xf32>
    %c0_34 = arith.constant 0 : index
    %c0_35 = arith.constant 0 : index
    %c0_36 = arith.constant 0 : index
    %67 = vector.load %arg9[%c0_34, %c0_35, %c0_36] : memref<2x16x32xf32, #tpu.memory_space<vmem>>, vector<2x16x32xf32>
    tpu.vector_store %arg9[%c0_34, %c0_35, %c0_36], %66 {strides = array<i32>} : memref<2x16x32xf32, #tpu.memory_space<vmem>>, vector<2x16x32xf32>,
    return
  }
  func.func @transform_0(%arg0: i32, %arg1: i32) -> (i32, i32, i32) {
    %c0_i32 = arith.constant 0 : i32
    %c0_i32_0 = arith.constant 0 : i32
    %c0_i32_1 = arith.constant 0 : i32
    return %arg0, %c0_i32, %c0_i32_0 : i32, i32, i32
  }
  func.func @transform_1(%arg0: i32, %arg1: i32) -> (i32, i32, i32) {
    %c0_i32 = arith.constant 0 : i32
    %c0_i32_0 = arith.constant 0 : i32
    %c0_i32_1 = arith.constant 0 : i32
    %c0_i32_2 = arith.constant 0 : i32
    return %c0_i32, %c0_i32_0, %c0_i32_1 : i32, i32, i32
  }
  func.func @transform_2(%arg0: i32, %arg1: i32) -> (i32, i32) {
    %c0_i32 = arith.constant 0 : i32
    %c0_i32_0 = arith.constant 0 : i32
    %c0_i32_1 = arith.constant 0 : i32
    return %c0_i32, %c0_i32_0 : i32, i32
  }
  func.func @transform_3(%arg0: i32, %arg1: i32) -> (i32, i32) {
    %c0_i32 = arith.constant 0 : i32
    %c0_i32_0 = arith.constant 0 : i32
    %c0_i32_1 = arith.constant 0 : i32
    return %c0_i32, %c0_i32_0 : i32, i32
  }
  func.func @transform_4(%arg0: i32, %arg1: i32) -> (i32, i32) {
    %c0_i32 = arith.constant 0 : i32
    %c0_i32_0 = arith.constant 0 : i32
    %c0_i32_1 = arith.constant 0 : i32
    return %c0_i32, %c0_i32_0 : i32, i32
  }
  func.func @transform_5(%arg0: i32, %arg1: i32) -> (i32, i32) {
    %c0_i32 = arith.constant 0 : i32
    %c0_i32_0 = arith.constant 0 : i32
    %c0_i32_1 = arith.constant 0 : i32
    return %c0_i32, %c0_i32_0 : i32, i32
  }
  func.func @transform_6(%arg0: i32, %arg1: i32) -> (i32, i32) {
    %c0_i32 = arith.constant 0 : i32
    %c0_i32_0 = arith.constant 0 : i32
    %c0_i32_1 = arith.constant 0 : i32
    return %c0_i32, %c0_i32_0 : i32, i32
  }
  func.func @transform_7(%arg0: i32, %arg1: i32) -> (i32, i32, i32) {
    %c0_i32 = arith.constant 0 : i32
    %c0_i32_0 = arith.constant 0 : i32
    return %arg0, %arg1, %c0_i32 : i32, i32, i32
  }
  func.func @transform_8(%arg0: i32, %arg1: i32) -> (i32, i32, i32, i32) {
    %c0_i32 = arith.constant 0 : i32
    %c0_i32_0 = arith.constant 0 : i32
    %c0_i32_1 = arith.constant 0 : i32
    return %arg0, %c0_i32, %arg1, %c0_i32_0 : i32, i32, i32, i32
  }
}

</mosaic_0001>

<llo_original>
// kernel: tpu_custom_call.1
$region0: #{tpu_custom_call.1}
  #allocation0 [shape = 'u32[]', space=smem, size = 0x4, offset = 0x4, fixed_abs, tag = 'smem constant byte address 0x4 - core index']
  #allocation1 [shape = 'u32[144,128]{1,0:T(1,128)}', space=vmem, size = 0x12000, scoped, tag = 'internal scratch']
  #allocation2 [shape = 'f32[2,16,32]{2,1,0:T(8,128)}', space=vmem, size = 0x4000, scoped, tag = 'scratch operand']
  #allocation3 [shape = 'f32[2,16,32]{2,1,0:T(8,128)}', space=vmem, size = 0x4000, scoped, tag = 'scratch operand']
  %s0 = inlined_call_operand.hbm [shape: f32[2,16,32], index: 0, kind: input, shape index: {}]
  %s1 = inlined_call_operand.hbm [shape: f32[1,16,32], index: 1, kind: input, shape index: {}]
  %s2 = inlined_call_operand.hbm [shape: f32[32,32], index: 2, kind: input, shape index: {}]
  %s3 = inlined_call_operand.hbm [shape: f32[32,64], index: 3, kind: input, shape index: {}]
  %s4 = inlined_call_operand.hbm [shape: f32[32,32], index: 4, kind: input, shape index: {}]
  %s5 = inlined_call_operand.vmem [shape: f32[1,32], index: 5, kind: input, shape index: {}]
  %s6 = inlined_call_operand.vmem [shape: f32[1,32], index: 6, kind: input, shape index: {}]
  %s7 = inlined_call_operand.hbm [shape: f32[2,16,32], index: 7, kind: output, shape index: {0}]
  %s8 = inlined_call_operand.hbm [shape: f32[2,1,16,16], index: 8, kind: output, shape index: {1}]
  %9 = xla_tuple %s7, %s8
  %s10 = sld [smem:[#allocation0]]
  $region70: #{tpu_custom_call.1} parent=0
    _
  %s12 = ssub.s32 1, %s10
  %s13 = scalar_select 0, %s12, %s10
  $region1: #{tpu_custom_call.1} parent=0
    #allocation4 [shape = 'u8[16384]{0}', space=vmem, size = 0x4000, scoped, tag = 'input window, operand 0, single buffered']
    #allocation5 [shape = 's32[1]{0}', space=sflag, size = 0x4, scoped, tag = 'scoped memory for tpu_custom_call.1']
    #allocation6 [shape = 's32[1]{0}', space=sflag, size = 0x4, scoped, tag = 'scoped memory for tpu_custom_call.1']
    #allocation7 [shape = 'u8[8192]{0}', space=vmem, size = 0x2000, scoped, tag = 'input window, operand 1, single buffered']
    #allocation8 [shape = 's32[1]{0}', space=sflag, size = 0x4, scoped, tag = 'scoped memory for tpu_custom_call.1']
    #allocation9 [shape = 'u8[16384]{0}', space=vmem, size = 0x4000, scoped, tag = 'input window, operand 2, single buffered']
    #allocation10 [shape = 'u8[16384]{0}', space=vmem, size = 0x4000, scoped, tag = 'input window, operand 3, single buffered']
    #allocation11 [shape = 's32[1]{0}', space=sflag, size = 0x4, scoped, tag = 'scoped memory for tpu_custom_call.1']
    #allocation12 [shape = 'u8[16384]{0}', space=vmem, size = 0x4000, scoped, tag = 'input window, operand 4, single buffered']
    #allocation13 [shape = 'u8[16384]{0}', space=vmem, size = 0x4000, scoped, tag = 'output window, operand 0, single buffered']
    #allocation14 [shape = 'u8[16384]{0}', space=vmem, size = 0x4000, scoped, tag = 'output window, operand 1, single buffered']
    #allocation15 [shape = 's32[1]{0}', space=sflag, size = 0x4, scoped, tag = 'scoped memory for tpu_custom_call.1']
    %14 = vsyncpa [#allocation5], 0
    %15 = vsyncpa [#allocation8], 0
    %16 = vsyncpa [#allocation11], 0
    %17 = vsyncpa [#allocation6], 0
    %18 = vsyncpa [#allocation15], 0
    // Predicated region
    $region2: #{tpu_custom_call.1} parent=1 // pred_check
      _
    $region3: #{tpu_custom_call.1} parent=1 // pred_check_branch
      %20 = sbr.rel (0) target = $region5
    $region4: #{tpu_custom_call.1} parent=1 // pred_region
      %s22 = ssub.s32 512, 512
      %23 = vsyncadd [#allocation5], %s22
      %s24 = sshll.u32 [#allocation4], 4
      %s25 = int_to_ptr.vmem [resolvable:$true] %s24
      %30 = dma.hbm_to_vmem [thread:$0]  %s0, 512, %s25, [#allocation5], 128, 128, 8
    $region5: #{tpu_custom_call.1} parent=1 // pred_fallthru
      _
    // Predicated region
    $region6: #{tpu_custom_call.1} parent=1 // pred_check
      _
    $region7: #{tpu_custom_call.1} parent=1 // pred_check_branch
      %32 = sbr.rel (0) target = $region9
    $region8: #{tpu_custom_call.1} parent=1 // pred_region
      %s34 = ssub.s32 256, 256
      %35 = vsyncadd [#allocation8], %s34
      %s36 = sshll.u32 [#allocation7], 4
      %s37 = int_to_ptr.vmem [resolvable:$true] %s36
      %42 = dma.hbm_to_vmem [thread:$0]  %s1, 256, %s37, [#allocation8], 128, 128, 8
    $region9: #{tpu_custom_call.1} parent=1 // pred_fallthru
      _
    // Predicated region
    $region10: #{tpu_custom_call.1} parent=1 // pred_check
      _
    $region11: #{tpu_custom_call.1} parent=1 // pred_check_branch
      %44 = sbr.rel (0) target = $region13
    $region12: #{tpu_custom_call.1} parent=1 // pred_region
      %s46 = ssub.s32 512, 512
      %47 = vsyncadd [#allocation8], %s46
      %s48 = sshll.u32 [#allocation9], 4
      %s49 = int_to_ptr.vmem [resolvable:$true] %s48
      %54 = dma.hbm_to_vmem [thread:$0]  %s2, 512, %s49, [#allocation8], 128, 128, 8
    $region13: #{tpu_custom_call.1} parent=1 // pred_fallthru
      _
    // Predicated region
    $region14: #{tpu_custom_call.1} parent=1 // pred_check
      _
    $region15: #{tpu_custom_call.1} parent=1 // pred_check_branch
      %56 = sbr.rel (0) target = $region17
    $region16: #{tpu_custom_call.1} parent=1 // pred_region
      %s58 = ssub.s32 512, 512
      %59 = vsyncadd [#allocation11], %s58
      %s60 = sshll.u32 [#allocation10], 4
      %s61 = int_to_ptr.vmem [resolvable:$true] %s60
      %66 = dma.hbm_to_vmem [thread:$0]  %s3, 512, %s61, [#allocation11], 128, 128, 8
    $region17: #{tpu_custom_call.1} parent=1 // pred_fallthru
      _
    // Predicated region
    $region18: #{tpu_custom_call.1} parent=1 // pred_check
      _
    $region19: #{tpu_custom_call.1} parent=1 // pred_check_branch
      %68 = sbr.rel (0) target = $region21
    $region20: #{tpu_custom_call.1} parent=1 // pred_region
      %s70 = ssub.s32 512, 512
      %71 = vsyncadd [#allocation11], %s70
      %s72 = sshll.u32 [#allocation12], 4
      %s73 = int_to_ptr.vmem [resolvable:$true] %s72
      %78 = dma.hbm_to_vmem [thread:$0]  %s4, 512, %s73, [#allocation11], 128, 128, 8
    $region21: #{tpu_custom_call.1} parent=1 // pred_fallthru
      _
    // Predicated region
    $region22: #{tpu_custom_call.1} parent=1 // pred_check
      _
    $region23: #{tpu_custom_call.1} parent=1 // pred_check_branch
      %80 = sbr.rel (0) target = $region25
    $region24: #{tpu_custom_call.1} parent=1 // pred_region
      _
    $region25: #{tpu_custom_call.1} parent=1 // pred_fallthru
      _
    // Predicated region
    $region26: #{tpu_custom_call.1} parent=1 // pred_check
      _
    $region27: #{tpu_custom_call.1} parent=1 // pred_check_branch
      %82 = sbr.rel (0) target = $region29
    $region28: #{tpu_custom_call.1} parent=1 // pred_region
      _
    $region29: #{tpu_custom_call.1} parent=1 // pred_fallthru
      _
    // Predicated region
    $region30: #{tpu_custom_call.1} parent=1 // pred_check
      _
    $region31: #{tpu_custom_call.1} parent=1 // pred_check_branch
      %84 = sbr.rel (0) target = $region33
    $region32: #{tpu_custom_call.1} parent=1 // pred_region
      %85 = dma.done [#allocation5], 512
    $region33: #{tpu_custom_call.1} parent=1 // pred_fallthru
      _
    // Predicated region
    $region34: #{tpu_custom_call.1} parent=1 // pred_check
      _
    $region35: #{tpu_custom_call.1} parent=1 // pred_check_branch
      %87 = sbr.rel (0) target = $region37
    $region36: #{tpu_custom_call.1} parent=1 // pred_region
      %88 = dma.done [#allocation8], 256
    $region37: #{tpu_custom_call.1} parent=1 // pred_fallthru
      _
    // Predicated region
    $region38: #{tpu_custom_call.1} parent=1 // pred_check
      _
    $region39: #{tpu_custom_call.1} parent=1 // pred_check_branch
      %90 = sbr.rel (0) target = $region41
    $region40: #{tpu_custom_call.1} parent=1 // pred_region
      %91 = dma.done [#allocation8], 512
    $region41: #{tpu_custom_call.1} parent=1 // pred_fallthru
      _
    // Predicated region
    $region42: #{tpu_custom_call.1} parent=1 // pred_check
      _
    $region43: #{tpu_custom_call.1} parent=1 // pred_check_branch
      %93 = sbr.rel (0) target = $region45
    $region44: #{tpu_custom_call.1} parent=1 // pred_region
      %94 = dma.done [#allocation11], 512
    $region45: #{tpu_custom_call.1} parent=1 // pred_fallthru
      _
    // Predicated region
    $region46: #{tpu_custom_call.1} parent=1 // pred_check
      _
    $region47: #{tpu_custom_call.1} parent=1 // pred_check_branch
      %96 = sbr.rel (0) target = $region49
    $region48: #{tpu_custom_call.1} parent=1 // pred_region
      %97 = dma.done [#allocation11], 512
    $region49: #{tpu_custom_call.1} parent=1 // pred_fallthru
      _
    %p98 = scmp.eq.s32.totalorder 0, 0
    // Predicated region
    $region50: #{tpu_custom_call.1} parent=1 // pred_check
      %p99 = pneg %p98
    $region51: #{tpu_custom_call.1} parent=1 // pred_check_branch
      %101 = sbr.rel (%p99) target = $region53
    $region52: #{tpu_custom_call.1} parent=1 // pred_region
      %v102 = vld [vmem:[#allocation4] sm:$0xff]
      %v103 = vld [vmem:[#allocation4 + $0x8] sm:$0xff]
      %v104 = vld [vmem:[#allocation4 + $0x10] sm:$0xff]
      %v105 = vld [vmem:[#allocation4 + $0x18] sm:$0xff]
      %v106 = vld [vmem:[#allocation7] sm:$0xff]
      %v107 = vld [vmem:[#allocation7 + $0x8] sm:$0xff]
      %v108 = vadd.f32 %v102, %v106
      %v109 = vadd.f32 %v103, %v107
      %v110 = vadd.f32 %v104, %v106
      %v111 = vadd.f32 %v105, %v107
      %v112 = vld [vmem:[#allocation10] sm:$0xff]
      %v113 = vld [vmem:[#allocation10 + $0x8] sm:$0xff]
      %v114 = vld [vmem:[#allocation10 + $0x10] sm:$0xff]
      %v115 = vld [vmem:[#allocation10 + $0x18] sm:$0xff]
      %vm116 = vcmask 261120
      %v118 = vsel %vm116, %v108, 0
      %v121 = vsel %vm116, %v109, 0
      %v124 = vsel %vm116, %v110, 0
      %v127 = vsel %vm116, %v111, 0
      %129 = vmatprep.subr.mxu0 0.0
      %130 = vmatpush1.msra.mxu0 %v112
      %131 = vmatprep.subr.mxu0 0.0
      %132 = vmatpush1.msra.mxu0 %v113
      %133 = vmatprep.subr.mxu0 0.0
      %134 = vmatpush1.msra.mxu0 %v114
      %135 = vmatprep.subr.mxu0 0.0
      %136 = vmatpush1.msra.mxu0 %v115
      %137 = vmatprep.subr.mxu0 0.0
      %138 = vmatpush1.msra.mxu0 0.0
      %139 = vmatprep.subr.mxu0 0.0
      %140 = vmatpush1.msra.mxu0 0.0
      %141 = vmatprep.subr.mxu0 0.0
      %142 = vmatpush1.msra.mxu0 0.0
      %143 = vmatprep.subr.mxu0 0.0
      %144 = vmatpush1.msra.mxu0 0.0
      %145 = vmatprep.subr.mxu0 0.0
      %146 = vmatpush1.msra.mxu0 0.0
      %147 = vmatprep.subr.mxu0 0.0
      %148 = vmatpush1.msra.mxu0 0.0
      %149 = vmatprep.subr.mxu0 0.0
      %150 = vmatpush1.msra.mxu0 0.0
      %151 = vmatprep.subr.mxu0 0.0
      %152 = vmatpush1.msra.mxu0 0.0
      %153 = vmatprep.subr.mxu0 0.0
      %154 = vmatpush1.msra.mxu0 0.0
      %155 = vmatprep.subr.mxu0 0.0
      %156 = vmatpush1.msra.mxu0 0.0
      %157 = vmatprep.subr.mxu0 0.0
      %158 = vmatpush1.msra.mxu0 0.0
      %159 = vmatprep.subr.mxu0 0.0
      %160 = vmatpush1.msra.mxu0 0.0
      %161 = vmatprep.subr.mxu0 0.0
      %162 = vmatpush1.msra.mxu0 0.0
      %163 = vmatprep.subr.mxu0 0.0
      %164 = vmatpush1.msra.mxu0 0.0
      %165 = vmatprep.subr.mxu0 0.0
      %166 = vmatpush1.msra.mxu0 0.0
      %167 = vmatprep.subr.mxu0 0.0
      %168 = vmatpush1.msra.mxu0 0.0
      %169 = vmatprep.subr.mxu0 0.0
      %170 = vmatpush1.msra.mxu0 0.0
      %171 = vmatprep.subr.mxu0 0.0
      %172 = vmatpush1.msra.mxu0 0.0
      %173 = vmatprep.subr.mxu0 0.0
      %174 = vmatpush1.msra.mxu0 0.0
      %175 = vmatprep.subr.mxu0 0.0
      %176 = vmatpush1.msra.mxu0 0.0
      %177 = vmatprep.subr.mxu0 0.0
      %178 = vmatpush1.msra.mxu0 0.0
      %179 = vmatprep.subr.mxu0 0.0
      %180 = vmatpush1.msra.mxu0 0.0
      %181 = vmatprep.subr.mxu0 0.0
      %182 = vmatpush1.msra.mxu0 0.0
      %183 = vmatprep.subr.mxu0 0.0
      %184 = vmatpush1.msra.mxu0 0.0
      %185 = vmatprep.subr.mxu0 0.0
      %186 = vmatpush1.msra.mxu0 0.0
      %187 = vmatprep.subr.mxu0 0.0
      %188 = vmatpush1.msra.mxu0 0.0
      %189 = vmatprep.subr.mxu0 0.0
      %190 = vmatpush1.msra.mxu0 0.0
      %191 = vmatprep.subr.mxu0 0.0
      %192 = vmatpush1.msra.mxu0 0.0
      %193 = vmatprep.mubr.f32.mxu0 0.0
      %194 = vmatmul.mubr.f32.gmra.mrb[0].mxu0 %v118
      %v195 = vpop.f32.mrb[0].mxu0
      %v196 = vadd.f32 0.0, %v195
      %v197 = vpop.f32.mrb[0].mxu0
      %198 = vmatprep.mubr.f32.mxu0 0.0
      %199 = vmatmul.mubr.f32.gmra.mrb[0].mxu0 %v121
      %v200 = vpop.f32.mrb[0].mxu0
      %v201 = vadd.f32 0.0, %v200
      %v202 = vpop.f32.mrb[0].mxu0
      %203 = vmatprep.mubr.f32.mxu0 0.0
      %204 = vmatmul.mubr.f32.gmra.mrb[0].mxu0 %v124
      %v205 = vpop.f32.mrb[0].mxu0
      %v206 = vadd.f32 0.0, %v205
      %v207 = vpop.f32.mrb[0].mxu0
      %208 = vmatprep.mubr.f32.mxu0 0.0
      %209 = vmatmul.mubr.f32.gmra.mrb[0].mxu0 %v127
      %v210 = vpop.f32.mrb[0].mxu0
      %v211 = vadd.f32 0.0, %v210
      %v212 = vpop.f32.mrb[0].mxu0
      %213 = vdwg.mxu0
      %214 = vst.msk [vmem:[#allocation2] sm:$0xff] %vm116, %v196
      %215 = vst.msk [vmem:[#allocation2 + $0x8] sm:$0xff] %vm116, %v201
      %216 = vst.msk [vmem:[#allocation2 + $0x10] sm:$0xff] %vm116, %v206
      %217 = vst.msk [vmem:[#allocation2 + $0x18] sm:$0xff] %vm116, %v211
      %222 = vrot.lane.b32.xlu0 %v196, 96
      %v223 = vpop.permute.xlu0 %222
      %224 = vrot.lane.b32.xlu0 %v201, 96
      %v225 = vpop.permute.xlu0 %224
      %226 = vrot.lane.b32.xlu0 %v206, 96
      %v227 = vpop.permute.xlu0 %226
      %228 = vrot.lane.b32.xlu0 %v211, 96
      %v229 = vpop.permute.xlu0 %228
      %234 = vst.msk [vmem:[#allocation3] sm:$0xff] %vm116, %v223
      %235 = vst.msk [vmem:[#allocation3 + $0x8] sm:$0xff] %vm116, %v225
      %236 = vst.msk [vmem:[#allocation3 + $0x10] sm:$0xff] %vm116, %v227
      %237 = vst.msk [vmem:[#allocation3 + $0x18] sm:$0xff] %vm116, %v229
    $region53: #{tpu_custom_call.1} parent=1 // pred_fallthru
      _
    %s238 = smul.u32 0, 16
    %s239 = scalar_lea.vmem [#allocation4], %s238
    %v240 = vld [vmem:[%s239] sm:$0xff]
    %v241 = vld [vmem:[%s239 + $0x8] sm:$0xff]
    %v242 = vld [vmem:[%s239 + $0x10] sm:$0xff]
    %v243 = vld [vmem:[%s239 + $0x18] sm:$0xff]
    %s244 = scalar_lea.vmem [#allocation7], %s238
    %v245 = vld [vmem:[%s244] sm:$0xff]
    %v246 = vld [vmem:[%s244 + $0x8] sm:$0xff]
    %v247 = vadd.f32 %v240, %v245
    %v248 = vadd.f32 %v241, %v246
    %v249 = vadd.f32 %v242, %v245
    %v250 = vadd.f32 %v243, %v246
    %v251 = vld [vmem:[#allocation9] sm:$0xff]
    %v252 = vld [vmem:[#allocation9 + $0x8] sm:$0xff]
    %v253 = vld [vmem:[#allocation9 + $0x10] sm:$0xff]
    %v254 = vld [vmem:[#allocation9 + $0x18] sm:$0xff]
    %vm255 = vcmask 261120
    %v257 = vsel %vm255, %v247, 0
    %v260 = vsel %vm255, %v248, 0
    %v263 = vsel %vm255, %v249, 0
    %v266 = vsel %vm255, %v250, 0
    %268 = vmatprep.subr.mxu0 0.0
    %269 = vmatpush1.msra.mxu0 %v251
    %270 = vmatprep.subr.mxu0 0.0
    %271 = vmatpush1.msra.mxu0 %v252
    %272 = vmatprep.subr.mxu0 0.0
    %273 = vmatpush1.msra.mxu0 %v253
    %274 = vmatprep.subr.mxu0 0.0
    %275 = vmatpush1.msra.mxu0 %v254
    %276 = vmatprep.subr.mxu0 0.0
    %277 = vmatpush1.msra.mxu0 0.0
    %278 = vmatprep.subr.mxu0 0.0
    %279 = vmatpush1.msra.mxu0 0.0
    %280 = vmatprep.subr.mxu0 0.0
    %281 = vmatpush1.msra.mxu0 0.0
    %282 = vmatprep.subr.mxu0 0.0
    %283 = vmatpush1.msra.mxu0 0.0
    %284 = vmatprep.subr.mxu0 0.0
    %285 = vmatpush1.msra.mxu0 0.0
    %286 = vmatprep.subr.mxu0 0.0
    %287 = vmatpush1.msra.mxu0 0.0
    %288 = vmatprep.subr.mxu0 0.0
    %289 = vmatpush1.msra.mxu0 0.0
    %290 = vmatprep.subr.mxu0 0.0
    %291 = vmatpush1.msra.mxu0 0.0
    %292 = vmatprep.subr.mxu0 0.0
    %293 = vmatpush1.msra.mxu0 0.0
    %294 = vmatprep.subr.mxu0 0.0
    %295 = vmatpush1.msra.mxu0 0.0
    %296 = vmatprep.subr.mxu0 0.0
    %297 = vmatpush1.msra.mxu0 0.0
    %298 = vmatprep.subr.mxu0 0.0
    %299 = vmatpush1.msra.mxu0 0.0
    %300 = vmatprep.subr.mxu0 0.0
    %301 = vmatpush1.msra.mxu0 0.0
    %302 = vmatprep.subr.mxu0 0.0
    %303 = vmatpush1.msra.mxu0 0.0
    %304 = vmatprep.subr.mxu0 0.0
    %305 = vmatpush1.msra.mxu0 0.0
    %306 = vmatprep.subr.mxu0 0.0
    %307 = vmatpush1.msra.mxu0 0.0
    %308 = vmatprep.subr.mxu0 0.0
    %309 = vmatpush1.msra.mxu0 0.0
    %310 = vmatprep.subr.mxu0 0.0
    %311 = vmatpush1.msra.mxu0 0.0
    %312 = vmatprep.subr.mxu0 0.0
    %313 = vmatpush1.msra.mxu0 0.0
    %314 = vmatprep.subr.mxu0 0.0
    %315 = vmatpush1.msra.mxu0 0.0
    %316 = vmatprep.subr.mxu0 0.0
    %317 = vmatpush1.msra.mxu0 0.0
    %318 = vmatprep.subr.mxu0 0.0
    %319 = vmatpush1.msra.mxu0 0.0
    %320 = vmatprep.subr.mxu0 0.0
    %321 = vmatpush1.msra.mxu0 0.0
    %322 = vmatprep.subr.mxu0 0.0
    %323 = vmatpush1.msra.mxu0 0.0
    %324 = vmatprep.subr.mxu0 0.0
    %325 = vmatpush1.msra.mxu0 0.0
    %326 = vmatprep.subr.mxu0 0.0
    %327 = vmatpush1.msra.mxu0 0.0
    %328 = vmatprep.subr.mxu0 0.0
    %329 = vmatpush1.msra.mxu0 0.0
    %330 = vmatprep.subr.mxu0 0.0
    %331 = vmatpush1.msra.mxu0 0.0
    %332 = vmatprep.mubr.f32.mxu0 0.0
    %333 = vmatmul.mubr.f32.gmra.mrb[0].mxu0 %v257
    %v334 = vpop.f32.mrb[0].mxu0
    %v335 = vadd.f32 0.0, %v334
    %v336 = vpop.f32.mrb[0].mxu0
    %337 = vmatprep.mubr.f32.mxu0 0.0
    %338 = vmatmul.mubr.f32.gmra.mrb[0].mxu0 %v260
    %v339 = vpop.f32.mrb[0].mxu0
    %v340 = vadd.f32 0.0, %v339
    %v341 = vpop.f32.mrb[0].mxu0
    %342 = vmatprep.mubr.f32.mxu0 0.0
    %343 = vmatmul.mubr.f32.gmra.mrb[0].mxu0 %v263
    %v344 = vpop.f32.mrb[0].mxu0
    %v345 = vadd.f32 0.0, %v344
    %v346 = vpop.f32.mrb[0].mxu0
    %347 = vmatprep.mubr.f32.mxu0 0.0
    %348 = vmatmul.mubr.f32.gmra.mrb[0].mxu0 %v266
    %v349 = vpop.f32.mrb[0].mxu0
    %v350 = vadd.f32 0.0, %v349
    %v351 = vpop.f32.mrb[0].mxu0
    %352 = vdwg.mxu0
    %v353 = vld [vmem:[#allocation2] sm:$0xff]
    %v354 = vld [vmem:[#allocation2 + $0x8] sm:$0xff]
    %v355 = vld [vmem:[#allocation2 + $0x10] sm:$0xff]
    %v356 = vld [vmem:[#allocation2 + $0x18] sm:$0xff]
    %v357 = vld [vmem:[#allocation3] sm:$0xff]
    %v358 = vld [vmem:[#allocation3 + $0x8] sm:$0xff]
    %v359 = vld [vmem:[#allocation3 + $0x10] sm:$0xff]
    %v360 = vld [vmem:[#allocation3 + $0x18] sm:$0xff]
    %v362 = vsel %vm255, %v335, 0
    %v365 = vsel %vm255, %v340, 0
    %v368 = vsel %vm255, %v353, 0
    %v371 = vsel %vm255, %v354, 0
    %373 = vmatprep.subr.mxu0 0.0
    %374 = vmatpush1.xpose.msra.mxu0 %v368
    %375 = vmatprep.subr.mxu0 0.0
    %376 = vmatpush1.xpose.msra.mxu0 %v371
    %377 = vmatprep.subr.mxu0 0.0
    %378 = vmatpush1.xpose.msra.mxu0 0.0
    %379 = vmatprep.subr.mxu0 0.0
    %380 = vmatpush1.xpose.msra.mxu0 0.0
    %381 = vmatprep.subr.mxu0 0.0
    %382 = vmatpush1.xpose.msra.mxu0 0.0
    %383 = vmatprep.subr.mxu0 0.0
    %384 = vmatpush1.xpose.msra.mxu0 0.0
    %385 = vmatprep.subr.mxu0 0.0
    %386 = vmatpush1.xpose.msra.mxu0 0.0
    %387 = vmatprep.subr.mxu0 0.0
    %388 = vmatpush1.xpose.msra.mxu0 0.0
    %389 = vmatprep.subr.mxu0 0.0
    %390 = vmatpush1.xpose.msra.mxu0 0.0
    %391 = vmatprep.subr.mxu0 0.0
    %392 = vmatpush1.xpose.msra.mxu0 0.0
    %393 = vmatprep.subr.mxu0 0.0
    %394 = vmatpush1.xpose.msra.mxu0 0.0
    %395 = vmatprep.subr.mxu0 0.0
    %396 = vmatpush1.xpose.msra.mxu0 0.0
    %397 = vmatprep.subr.mxu0 0.0
    %398 = vmatpush1.xpose.msra.mxu0 0.0
    %399 = vmatprep.subr.mxu0 0.0
    %400 = vmatpush1.xpose.msra.mxu0 0.0
    %401 = vmatprep.subr.mxu0 0.0
    %402 = vmatpush1.xpose.msra.mxu0 0.0
    %403 = vmatprep.subr.mxu0 0.0
    %404 = vmatpush1.xpose.msra.mxu0 0.0
    %405 = vmatprep.subr.mxu0 0.0
    %406 = vmatpush1.xpose.msra.mxu0 0.0
    %407 = vmatprep.subr.mxu0 0.0
    %408 = vmatpush1.xpose.msra.mxu0 0.0
    %409 = vmatprep.subr.mxu0 0.0
    %410 = vmatpush1.xpose.msra.mxu0 0.0
    %411 = vmatprep.subr.mxu0 0.0
    %412 = vmatpush1.xpose.msra.mxu0 0.0
    %413 = vmatprep.subr.mxu0 0.0
    %414 = vmatpush1.xpose.msra.mxu0 0.0
    %415 = vmatprep.subr.mxu0 0.0
    %416 = vmatpush1.xpose.msra.mxu0 0.0
    %417 = vmatprep.subr.mxu0 0.0
    %418 = vmatpush1.xpose.msra.mxu0 0.0
    %419 = vmatprep.subr.mxu0 0.0
    %420 = vmatpush1.xpose.msra.mxu0 0.0
    %421 = vmatprep.subr.mxu0 0.0
    %422 = vmatpush1.xpose.msra.mxu0 0.0
    %423 = vmatprep.subr.mxu0 0.0
    %424 = vmatpush1.xpose.msra.mxu0 0.0
    %425 = vmatprep.subr.mxu0 0.0
    %426 = vmatpush1.xpose.msra.mxu0 0.0
    %427 = vmatprep.subr.mxu0 0.0
    %428 = vmatpush1.xpose.msra.mxu0 0.0
    %429 = vmatprep.subr.mxu0 0.0
    %430 = vmatpush1.xpose.msra.mxu0 0.0
    %431 = vmatprep.subr.mxu0 0.0
    %432 = vmatpush1.xpose.msra.mxu0 0.0
    %433 = vmatprep.subr.mxu0 0.0
    %434 = vmatpush1.xpose.msra.mxu0 0.0
    %435 = vmatprep.subr.mxu0 0.0
    %436 = vmatpush1.xpose.msra.mxu0 0.0
    %437 = vmatprep.mubr.f32.mxu0 0.0
    %438 = vmatmul.mubr.f32.gmra.mrb[0].mxu0 %v362
    %v439 = vpop.f32.mrb[0].mxu0
    %v440 = vadd.f32 0.0, %v439
    %v441 = vpop.f32.mrb[0].mxu0
    %442 = vmatprep.mubr.f32.mxu0 0.0
    %443 = vmatmul.mubr.f32.gmra.mrb[0].mxu0 %v365
    %v444 = vpop.f32.mrb[0].mxu0
    %v445 = vadd.f32 0.0, %v444
    %v446 = vpop.f32.mrb[0].mxu0
    %447 = vdwg.mxu0
    %v449 = vsel %vm255, %v345, 0
    %v452 = vsel %vm255, %v350, 0
    %v455 = vsel %vm255, %v355, 0
    %v458 = vsel %vm255, %v356, 0
    %460 = vmatprep.subr.mxu0 0.0
    %461 = vmatpush1.xpose.msra.mxu0 %v455
    %462 = vmatprep.subr.mxu0 0.0
    %463 = vmatpush1.xpose.msra.mxu0 %v458
    %464 = vmatprep.subr.mxu0 0.0
    %465 = vmatpush1.xpose.msra.mxu0 0.0
    %466 = vmatprep.subr.mxu0 0.0
    %467 = vmatpush1.xpose.msra.mxu0 0.0
    %468 = vmatprep.subr.mxu0 0.0
    %469 = vmatpush1.xpose.msra.mxu0 0.0
    %470 = vmatprep.subr.mxu0 0.0
    %471 = vmatpush1.xpose.msra.mxu0 0.0
    %472 = vmatprep.subr.mxu0 0.0
    %473 = vmatpush1.xpose.msra.mxu0 0.0
    %474 = vmatprep.subr.mxu0 0.0
    %475 = vmatpush1.xpose.msra.mxu0 0.0
    %476 = vmatprep.subr.mxu0 0.0
    %477 = vmatpush1.xpose.msra.mxu0 0.0
    %478 = vmatprep.subr.mxu0 0.0
    %479 = vmatpush1.xpose.msra.mxu0 0.0
    %480 = vmatprep.subr.mxu0 0.0
    %481 = vmatpush1.xpose.msra.mxu0 0.0
    %482 = vmatprep.subr.mxu0 0.0
    %483 = vmatpush1.xpose.msra.mxu0 0.0
    %484 = vmatprep.subr.mxu0 0.0
    %485 = vmatpush1.xpose.msra.mxu0 0.0
    %486 = vmatprep.subr.mxu0 0.0
    %487 = vmatpush1.xpose.msra.mxu0 0.0
    %488 = vmatprep.subr.mxu0 0.0
    %489 = vmatpush1.xpose.msra.mxu0 0.0
    %490 = vmatprep.subr.mxu0 0.0
    %491 = vmatpush1.xpose.msra.mxu0 0.0
    %492 = vmatprep.subr.mxu0 0.0
    %493 = vmatpush1.xpose.msra.mxu0 0.0
    %494 = vmatprep.subr.mxu0 0.0
    %495 = vmatpush1.xpose.msra.mxu0 0.0
    %496 = vmatprep.subr.mxu0 0.0
    %497 = vmatpush1.xpose.msra.mxu0 0.0
    %498 = vmatprep.subr.mxu0 0.0
    %499 = vmatpush1.xpose.msra.mxu0 0.0
    %500 = vmatprep.subr.mxu0 0.0
    %501 = vmatpush1.xpose.msra.mxu0 0.0
    %502 = vmatprep.subr.mxu0 0.0
    %503 = vmatpush1.xpose.msra.mxu0 0.0
    %504 = vmatprep.subr.mxu0 0.0
    %505 = vmatpush1.xpose.msra.mxu0 0.0
    %506 = vmatprep.subr.mxu0 0.0
    %507 = vmatpush1.xpose.msra.mxu0 0.0
    %508 = vmatprep.subr.mxu0 0.0
    %509 = vmatpush1.xpose.msra.mxu0 0.0
    %510 = vmatprep.subr.mxu0 0.0
    %511 = vmatpush1.xpose.msra.mxu0 0.0
    %512 = vmatprep.subr.mxu0 0.0
    %513 = vmatpush1.xpose.msra.mxu0 0.0
    %514 = vmatprep.subr.mxu0 0.0
    %515 = vmatpush1.xpose.msra.mxu0 0.0
    %516 = vmatprep.subr.mxu0 0.0
    %517 = vmatpush1.xpose.msra.mxu0 0.0
    %518 = vmatprep.subr.mxu0 0.0
    %519 = vmatpush1.xpose.msra.mxu0 0.0
    %520 = vmatprep.subr.mxu0 0.0
    %521 = vmatpush1.xpose.msra.mxu0 0.0
    %522 = vmatprep.subr.mxu0 0.0
    %523 = vmatpush1.xpose.msra.mxu0 0.0
    %524 = vmatprep.mubr.f32.mxu0 0.0
    %525 = vmatmul.mubr.f32.gmra.mrb[0].mxu0 %v449
    %v526 = vpop.f32.mrb[0].mxu0
    %v527 = vadd.f32 0.0, %v526
    %v528 = vpop.f32.mrb[0].mxu0
    %529 = vmatprep.mubr.f32.mxu0 0.0
    %530 = vmatmul.mubr.f32.gmra.mrb[0].mxu0 %v452
    %v531 = vpop.f32.mrb[0].mxu0
    %v532 = vadd.f32 0.0, %v531
    %v533 = vpop.f32.mrb[0].mxu0
    %534 = vdwg.mxu0
    %vm535 = vcmask 130048
    %v536 = vsel %vm535, %v440, -inf
    %537 = vmax.xlane.f32.xlu0 %v536
    %v538 = vpop.xlane.xlu0 %537
    %v539 = vsel %vm535, %v445, -inf
    %540 = vmax.xlane.f32.xlu0 %v539
    %v541 = vpop.xlane.xlu0 %540
    %v542 = vsel %vm535, %v527, -inf
    %543 = vmax.xlane.f32.xlu0 %v542
    %v544 = vpop.xlane.xlu0 %543
    %v545 = vsel %vm535, %v532, -inf
    %546 = vmax.xlane.f32.xlu0 %v545
    %v547 = vpop.xlane.xlu0 %546
    %v548 = vsub.f32 %v440, %v538
    %v549 = vsub.f32 %v445, %v541
    %v550 = vsub.f32 %v527, %v544
    %v551 = vsub.f32 %v532, %v547
    %v552 = vmul.f32 %v548, 1.442695
    %v553 = vpow.pop %v552
    %v554 = vmul.f32 %v549, 1.442695
    %v555 = vpow.pop %v554
    %v556 = vmul.f32 %v550, 1.442695
    %v557 = vpow.pop %v556
    %v558 = vmul.f32 %v551, 1.442695
    %v559 = vpow.pop %v558
    %v560 = vsel %vm535, %v553, 0.0
    %561 = vadd.xlane.f32.xlu0 %v560
    %v562 = vpop.xlane.xlu0 %561
    %v563 = vsel %vm535, %v555, 0.0
    %564 = vadd.xlane.f32.xlu0 %v563
    %v565 = vpop.xlane.xlu0 %564
    %v566 = vsel %vm535, %v557, 0.0
    %567 = vadd.xlane.f32.xlu0 %v566
    %v568 = vpop.xlane.xlu0 %567
    %v569 = vsel %vm535, %v559, 0.0
    %570 = vadd.xlane.f32.xlu0 %v569
    %v571 = vpop.xlane.xlu0 %570
    %v572 = vrcp.pop %v562
    %v573 = vrcp.pop %v565
    %v574 = vrcp.pop %v568
    %v575 = vrcp.pop %v571
    %v576 = vmul.f32 %v562, %v572
    %v577 = vmul.f32 %v565, %v573
    %v578 = vmul.f32 %v568, %v574
    %v579 = vmul.f32 %v571, %v575
    %v580 = vsub.f32 2.0, %v576
    %v581 = vsub.f32 2.0, %v577
    %v582 = vsub.f32 2.0, %v578
    %v583 = vsub.f32 2.0, %v579
    %v584 = vmul.f32 %v572, %v580
    %v585 = vmul.f32 %v573, %v581
    %v586 = vmul.f32 %v574, %v582
    %v587 = vmul.f32 %v575, %v583
    %v588 = vmul.f32 %v553, %v584
    %v589 = vmul.f32 %v555, %v585
    %v590 = vmul.f32 %v557, %v586
    %v591 = vmul.f32 %v559, %v587
    %592 = vst.msk [vmem:[#allocation14] sm:$0xff] %vm535, %v588
    %593 = vst.msk [vmem:[#allocation14 + $0x8] sm:$0xff] %vm535, %v589
    %594 = vst.msk [vmem:[#allocation14 + $0x10] sm:$0xff] %vm535, %v590
    %595 = vst.msk [vmem:[#allocation14 + $0x18] sm:$0xff] %vm535, %v591
    %v597 = vsel %vm535, %v588, 0
    %v600 = vsel %vm535, %v589, 0
    %602 = vmatprep.subr.mxu0 0.0
    %603 = vmatpush1.msra.mxu0 %v357
    %604 = vmatprep.subr.mxu0 0.0
    %605 = vmatpush1.msra.mxu0 %v358
    %606 = vmatprep.subr.mxu0 0.0
    %607 = vmatpush1.msra.mxu0 0.0
    %608 = vmatprep.subr.mxu0 0.0
    %609 = vmatpush1.msra.mxu0 0.0
    %610 = vmatprep.subr.mxu0 0.0
    %611 = vmatpush1.msra.mxu0 0.0
    %612 = vmatprep.subr.mxu0 0.0
    %613 = vmatpush1.msra.mxu0 0.0
    %614 = vmatprep.subr.mxu0 0.0
    %615 = vmatpush1.msra.mxu0 0.0
    %616 = vmatprep.subr.mxu0 0.0
    %617 = vmatpush1.msra.mxu0 0.0
    %618 = vmatprep.subr.mxu0 0.0
    %619 = vmatpush1.msra.mxu0 0.0
    %620 = vmatprep.subr.mxu0 0.0
    %621 = vmatpush1.msra.mxu0 0.0
    %622 = vmatprep.subr.mxu0 0.0
    %623 = vmatpush1.msra.mxu0 0.0
    %624 = vmatprep.subr.mxu0 0.0
    %625 = vmatpush1.msra.mxu0 0.0
    %626 = vmatprep.subr.mxu0 0.0
    %627 = vmatpush1.msra.mxu0 0.0
    %628 = vmatprep.subr.mxu0 0.0
    %629 = vmatpush1.msra.mxu0 0.0
    %630 = vmatprep.subr.mxu0 0.0
    %631 = vmatpush1.msra.mxu0 0.0
    %632 = vmatprep.subr.mxu0 0.0
    %633 = vmatpush1.msra.mxu0 0.0
    %634 = vmatprep.subr.mxu0 0.0
    %635 = vmatpush1.msra.mxu0 0.0
    %636 = vmatprep.subr.mxu0 0.0
    %637 = vmatpush1.msra.mxu0 0.0
    %638 = vmatprep.subr.mxu0 0.0
    %639 = vmatpush1.msra.mxu0 0.0
    %640 = vmatprep.subr.mxu0 0.0
    %641 = vmatpush1.msra.mxu0 0.0
    %642 = vmatprep.subr.mxu0 0.0
    %643 = vmatpush1.msra.mxu0 0.0
    %644 = vmatprep.subr.mxu0 0.0
    %645 = vmatpush1.msra.mxu0 0.0
    %646 = vmatprep.subr.mxu0 0.0
    %647 = vmatpush1.msra.mxu0 0.0
    %648 = vmatprep.subr.mxu0 0.0
    %649 = vmatpush1.msra.mxu0 0.0
    %650 = vmatprep.subr.mxu0 0.0
    %651 = vmatpush1.msra.mxu0 0.0
    %652 = vmatprep.subr.mxu0 0.0
    %653 = vmatpush1.msra.mxu0 0.0
    %654 = vmatprep.subr.mxu0 0.0
    %655 = vmatpush1.msra.mxu0 0.0
    %656 = vmatprep.subr.mxu0 0.0
    %657 = vmatpush1.msra.mxu0 0.0
    %658 = vmatprep.subr.mxu0 0.0
    %659 = vmatpush1.msra.mxu0 0.0
    %660 = vmatprep.subr.mxu0 0.0
    %661 = vmatpush1.msra.mxu0 0.0
    %662 = vmatprep.subr.mxu0 0.0
    %663 = vmatpush1.msra.mxu0 0.0
    %664 = vmatprep.subr.mxu0 0.0
    %665 = vmatpush1.msra.mxu0 0.0
    %666 = vmatprep.mubr.f32.mxu0 0.0
    %667 = vmatmul.mubr.f32.gmra.mrb[0].mxu0 %v597
    %v668 = vpop.f32.mrb[0].mxu0
    %v669 = vadd.f32 0.0, %v668
    %v670 = vpop.f32.mrb[0].mxu0
    %671 = vmatprep.mubr.f32.mxu0 0.0
    %672 = vmatmul.mubr.f32.gmra.mrb[0].mxu0 %v600
    %v673 = vpop.f32.mrb[0].mxu0
    %v674 = vadd.f32 0.0, %v673
    %v675 = vpop.f32.mrb[0].mxu0
    %676 = vdwg.mxu0
    %v678 = vsel %vm535, %v590, 0
    %v681 = vsel %vm535, %v591, 0
    %683 = vmatprep.subr.mxu0 0.0
    %684 = vmatpush1.msra.mxu0 %v359
    %685 = vmatprep.subr.mxu0 0.0
    %686 = vmatpush1.msra.mxu0 %v360
    %687 = vmatprep.subr.mxu0 0.0
    %688 = vmatpush1.msra.mxu0 0.0
    %689 = vmatprep.subr.mxu0 0.0
    %690 = vmatpush1.msra.mxu0 0.0
    %691 = vmatprep.subr.mxu0 0.0
    %692 = vmatpush1.msra.mxu0 0.0
    %693 = vmatprep.subr.mxu0 0.0
    %694 = vmatpush1.msra.mxu0 0.0
    %695 = vmatprep.subr.mxu0 0.0
    %696 = vmatpush1.msra.mxu0 0.0
    %697 = vmatprep.subr.mxu0 0.0
    %698 = vmatpush1.msra.mxu0 0.0
    %699 = vmatprep.subr.mxu0 0.0
    %700 = vmatpush1.msra.mxu0 0.0
    %701 = vmatprep.subr.mxu0 0.0
    %702 = vmatpush1.msra.mxu0 0.0
    %703 = vmatprep.subr.mxu0 0.0
    %704 = vmatpush1.msra.mxu0 0.0
    %705 = vmatprep.subr.mxu0 0.0
    %706 = vmatpush1.msra.mxu0 0.0
    %707 = vmatprep.subr.mxu0 0.0
    %708 = vmatpush1.msra.mxu0 0.0
    %709 = vmatprep.subr.mxu0 0.0
    %710 = vmatpush1.msra.mxu0 0.0
    %711 = vmatprep.subr.mxu0 0.0
    %712 = vmatpush1.msra.mxu0 0.0
    %713 = vmatprep.subr.mxu0 0.0
    %714 = vmatpush1.msra.mxu0 0.0
    %715 = vmatprep.subr.mxu0 0.0
    %716 = vmatpush1.msra.mxu0 0.0
    %717 = vmatprep.subr.mxu0 0.0
    %718 = vmatpush1.msra.mxu0 0.0
    %719 = vmatprep.subr.mxu0 0.0
    %720 = vmatpush1.msra.mxu0 0.0
    %721 = vmatprep.subr.mxu0 0.0
    %722 = vmatpush1.msra.mxu0 0.0
    %723 = vmatprep.subr.mxu0 0.0
    %724 = vmatpush1.msra.mxu0 0.0
    %725 = vmatprep.subr.mxu0 0.0
    %726 = vmatpush1.msra.mxu0 0.0
    %727 = vmatprep.subr.mxu0 0.0
    %728 = vmatpush1.msra.mxu0 0.0
    %729 = vmatprep.subr.mxu0 0.0
    %730 = vmatpush1.msra.mxu0 0.0
    %731 = vmatprep.subr.mxu0 0.0
    %732 = vmatpush1.msra.mxu0 0.0
    %733 = vmatprep.subr.mxu0 0.0
    %734 = vmatpush1.msra.mxu0 0.0
    %735 = vmatprep.subr.mxu0 0.0
    %736 = vmatpush1.msra.mxu0 0.0
    %737 = vmatprep.subr.mxu0 0.0
    %738 = vmatpush1.msra.mxu0 0.0
    %739 = vmatprep.subr.mxu0 0.0
    %740 = vmatpush1.msra.mxu0 0.0
    %741 = vmatprep.subr.mxu0 0.0
    %742 = vmatpush1.msra.mxu0 0.0
    %743 = vmatprep.subr.mxu0 0.0
    %744 = vmatpush1.msra.mxu0 0.0
    %745 = vmatprep.subr.mxu0 0.0
    %746 = vmatpush1.msra.mxu0 0.0
    %747 = vmatprep.mubr.f32.mxu0 0.0
    %748 = vmatmul.mubr.f32.gmra.mrb[0].mxu0 %v678
    %v749 = vpop.f32.mrb[0].mxu0
    %v750 = vadd.f32 0.0, %v749
    %v751 = vpop.f32.mrb[0].mxu0
    %752 = vmatprep.mubr.f32.mxu0 0.0
    %753 = vmatmul.mubr.f32.gmra.mrb[0].mxu0 %v681
    %v754 = vpop.f32.mrb[0].mxu0
    %v755 = vadd.f32 0.0, %v754
    %v756 = vpop.f32.mrb[0].mxu0
    %757 = vdwg.mxu0
    %v758 = vld [vmem:[#allocation12] sm:$0xff]
    %v759 = vld [vmem:[#allocation12 + $0x8] sm:$0xff]
    %v760 = vld [vmem:[#allocation12 + $0x10] sm:$0xff]
    %v761 = vld [vmem:[#allocation12 + $0x18] sm:$0xff]
    %v763 = vsel %vm255, %v669, 0
    %v766 = vsel %vm255, %v674, 0
    %v769 = vsel %vm255, %v750, 0
    %v772 = vsel %vm255, %v755, 0
    %774 = vmatprep.subr.mxu0 0.0
    %775 = vmatpush1.msra.mxu0 %v758
    %776 = vmatprep.subr.mxu0 0.0
    %777 = vmatpush1.msra.mxu0 %v759
    %778 = vmatprep.subr.mxu0 0.0
    %779 = vmatpush1.msra.mxu0 %v760
    %780 = vmatprep.subr.mxu0 0.0
    %781 = vmatpush1.msra.mxu0 %v761
    %782 = vmatprep.subr.mxu0 0.0
    %783 = vmatpush1.msra.mxu0 0.0
    %784 = vmatprep.subr.mxu0 0.0
    %785 = vmatpush1.msra.mxu0 0.0
    %786 = vmatprep.subr.mxu0 0.0
    %787 = vmatpush1.msra.mxu0 0.0
    %788 = vmatprep.subr.mxu0 0.0
    %789 = vmatpush1.msra.mxu0 0.0
    %790 = vmatprep.subr.mxu0 0.0
    %791 = vmatpush1.msra.mxu0 0.0
    %792 = vmatprep.subr.mxu0 0.0
    %793 = vmatpush1.msra.mxu0 0.0
    %794 = vmatprep.subr.mxu0 0.0
    %795 = vmatpush1.msra.mxu0 0.0
    %796 = vmatprep.subr.mxu0 0.0
    %797 = vmatpush1.msra.mxu0 0.0
    %798 = vmatprep.subr.mxu0 0.0
    %799 = vmatpush1.msra.mxu0 0.0
    %800 = vmatprep.subr.mxu0 0.0
    %801 = vmatpush1.msra.mxu0 0.0
    %802 = vmatprep.subr.mxu0 0.0
    %803 = vmatpush1.msra.mxu0 0.0
    %804 = vmatprep.subr.mxu0 0.0
    %805 = vmatpush1.msra.mxu0 0.0
    %806 = vmatprep.subr.mxu0 0.0
    %807 = vmatpush1.msra.mxu0 0.0
    %808 = vmatprep.subr.mxu0 0.0
    %809 = vmatpush1.msra.mxu0 0.0
    %810 = vmatprep.subr.mxu0 0.0
    %811 = vmatpush1.msra.mxu0 0.0
    %812 = vmatprep.subr.mxu0 0.0
    %813 = vmatpush1.msra.mxu0 0.0
    %814 = vmatprep.subr.mxu0 0.0
    %815 = vmatpush1.msra.mxu0 0.0
    %816 = vmatprep.subr.mxu0 0.0
    %817 = vmatpush1.msra.mxu0 0.0
    %818 = vmatprep.subr.mxu0 0.0
    %819 = vmatpush1.msra.mxu0 0.0
    %820 = vmatprep.subr.mxu0 0.0
    %821 = vmatpush1.msra.mxu0 0.0
    %822 = vmatprep.subr.mxu0 0.0
    %823 = vmatpush1.msra.mxu0 0.0
    %824 = vmatprep.subr.mxu0 0.0
    %825 = vmatpush1.msra.mxu0 0.0
    %826 = vmatprep.subr.mxu0 0.0
    %827 = vmatpush1.msra.mxu0 0.0
    %828 = vmatprep.subr.mxu0 0.0
    %829 = vmatpush1.msra.mxu0 0.0
    %830 = vmatprep.subr.mxu0 0.0
    %831 = vmatpush1.msra.mxu0 0.0
    %832 = vmatprep.subr.mxu0 0.0
    %833 = vmatpush1.msra.mxu0 0.0
    %834 = vmatprep.subr.mxu0 0.0
    %835 = vmatpush1.msra.mxu0 0.0
    %836 = vmatprep.subr.mxu0 0.0
    %837 = vmatpush1.msra.mxu0 0.0
    %838 = vmatprep.mubr.f32.mxu0 0.0
    %839 = vmatmul.mubr.f32.gmra.mrb[0].mxu0 %v763
    %v840 = vpop.f32.mrb[0].mxu0
    %v841 = vadd.f32 %v247, %v840
    %v842 = vpop.f32.mrb[0].mxu0
    %843 = vmatprep.mubr.f32.mxu0 0.0
    %844 = vmatmul.mubr.f32.gmra.mrb[0].mxu0 %v766
    %v845 = vpop.f32.mrb[0].mxu0
    %v846 = vadd.f32 %v248, %v845
    %v847 = vpop.f32.mrb[0].mxu0
    %848 = vmatprep.mubr.f32.mxu0 0.0
    %849 = vmatmul.mubr.f32.gmra.mrb[0].mxu0 %v769
    %v850 = vpop.f32.mrb[0].mxu0
    %v851 = vadd.f32 %v249, %v850
    %v852 = vpop.f32.mrb[0].mxu0
    %853 = vmatprep.mubr.f32.mxu0 0.0
    %854 = vmatmul.mubr.f32.gmra.mrb[0].mxu0 %v772
    %v855 = vpop.f32.mrb[0].mxu0
    %v856 = vadd.f32 %v250, %v855
    %v857 = vpop.f32.mrb[0].mxu0
    %858 = vdwg.mxu0
    %v859 = vsel %vm255, %v841, 0.0
    %860 = vadd.xlane.f32.xlu0 %v859
    %v861 = vpop.xlane.xlu0 %860
    %v862 = vsel %vm255, %v846, 0.0
    %863 = vadd.xlane.f32.xlu0 %v862
    %v864 = vpop.xlane.xlu0 %863
    %v865 = vsel %vm255, %v851, 0.0
    %866 = vadd.xlane.f32.xlu0 %v865
    %v867 = vpop.xlane.xlu0 %866
    %v868 = vsel %vm255, %v856, 0.0
    %869 = vadd.xlane.f32.xlu0 %v868
    %v870 = vpop.xlane.xlu0 %869
    %v871 = vrcp.pop 32.0
    %v872 = vmul.f32 %v861, %v871
    %v873 = vmul.f32 %v864, %v871
    %v874 = vmul.f32 %v867, %v871
    %v875 = vmul.f32 %v870, %v871
    %v876 = vsub.f32 %v841, %v872
    %v877 = vsub.f32 %v846, %v873
    %v878 = vsub.f32 %v851, %v874
    %v879 = vsub.f32 %v856, %v875
    %v880 = vmul.f32 %v876, %v876
    %v881 = vmul.f32 %v877, %v877
    %v882 = vmul.f32 %v878, %v878
    %v883 = vmul.f32 %v879, %v879
    %v884 = vsel %vm255, %v880, 0.0
    %885 = vadd.xlane.f32.xlu0 %v884
    %v886 = vpop.xlane.xlu0 %885
    %v887 = vsel %vm255, %v881, 0.0
    %888 = vadd.xlane.f32.xlu0 %v887
    %v889 = vpop.xlane.xlu0 %888
    %v890 = vsel %vm255, %v882, 0.0
    %891 = vadd.xlane.f32.xlu0 %v890
    %v892 = vpop.xlane.xlu0 %891
    %v893 = vsel %vm255, %v883, 0.0
    %894 = vadd.xlane.f32.xlu0 %v893
    %v895 = vpop.xlane.xlu0 %894
    %v896 = vmul.f32 %v886, %v871
    %v897 = vmul.f32 %v889, %v871
    %v898 = vmul.f32 %v892, %v871
    %v899 = vmul.f32 %v895, %v871
    %v900 = vadd.f32 %v896, 1e-06
    %v901 = vadd.f32 %v897, 1e-06
    %v902 = vadd.f32 %v898, 1e-06
    %v903 = vadd.f32 %v899, 1e-06
    %v904 = vrsqrt.pop %v900
    %v905 = vrsqrt.pop %v901
    %v906 = vrsqrt.pop %v902
    %v907 = vrsqrt.pop %v903
    %v908 = vmul.f32 %v876, %v904
    %v909 = vmul.f32 %v877, %v905
    %v910 = vmul.f32 %v878, %v906
    %v911 = vmul.f32 %v879, %v907
    %v912 = vld [vmem:[%s5] sm:$0x1]
    %v914 = vlaneseq
    %v915 = vshrl.u32 %v914, 7
    %v916 = vsub.s32 0, %v915
    %v917 = vrot.slane %v912, %v916
    %v919 = vmul.f32 %v908, %v917
    %v920 = vmul.f32 %v909, %v917
    %v921 = vmul.f32 %v910, %v917
    %v922 = vmul.f32 %v911, %v917
    %v923 = vld [vmem:[%s6] sm:$0x1]
    %v925 = vlaneseq
    %v926 = vshrl.u32 %v925, 7
    %v927 = vsub.s32 0, %v926
    %v928 = vrot.slane %v923, %v927
    %v930 = vadd.f32 %v919, %v928
    %v931 = vadd.f32 %v920, %v928
    %v932 = vadd.f32 %v921, %v928
    %v933 = vadd.f32 %v922, %v928
    %934 = vst.msk [vmem:[#allocation13] sm:$0xff] %vm255, %v930
    %935 = vst.msk [vmem:[#allocation13 + $0x8] sm:$0xff] %vm255, %v931
    %936 = vst.msk [vmem:[#allocation13 + $0x10] sm:$0xff] %vm255, %v932
    %937 = vst.msk [vmem:[#allocation13 + $0x18] sm:$0xff] %vm255, %v933
    // Predicated region
    $region54: #{tpu_custom_call.1} parent=1 // pred_check
      _
    $region55: #{tpu_custom_call.1} parent=1 // pred_check_branch
      %939 = sbr.rel (0) target = $region57
    $region56: #{tpu_custom_call.1} parent=1 // pred_region
      %s941 = ssub.s32 512, 512
      %942 = vsyncadd [#allocation6], %s941
      %s943 = sshll.u32 [#allocation13], 4
      %s944 = int_to_ptr.vmem [resolvable:$true] %s943
      %949 = dma.vmem_to_hbm [thread:$0]  %s944, 512, %s7, [#allocation6], 128, 128, 8
    $region57: #{tpu_custom_call.1} parent=1 // pred_fallthru
      _
    // Predicated region
    $region58: #{tpu_custom_call.1} parent=1 // pred_check
      _
    $region59: #{tpu_custom_call.1} parent=1 // pred_check_branch
      %951 = sbr.rel (0) target = $region61
    $region60: #{tpu_custom_call.1} parent=1 // pred_region
      %s953 = ssub.s32 512, 512
      %954 = vsyncadd [#allocation15], %s953
      %s955 = sshll.u32 [#allocation14], 4
      %s956 = int_to_ptr.vmem [resolvable:$true] %s955
      %961 = dma.vmem_to_hbm [thread:$0]  %s956, 512, %s8, [#allocation15], 128, 128, 8
    $region61: #{tpu_custom_call.1} parent=1 // pred_fallthru
      _
    // Predicated region
    $region62: #{tpu_custom_call.1} parent=1 // pred_check
      _
    $region63: #{tpu_custom_call.1} parent=1 // pred_check_branch
      %963 = sbr.rel (0) target = $region65
    $region64: #{tpu_custom_call.1} parent=1 // pred_region
      %964 = dma.done [#allocation6], 512
    $region65: #{tpu_custom_call.1} parent=1 // pred_fallthru
      _
    // Predicated region
    $region66: #{tpu_custom_call.1} parent=1 // pred_check
      _
    $region67: #{tpu_custom_call.1} parent=1 // pred_check_branch
      %966 = sbr.rel (0) target = $region69
    $region68: #{tpu_custom_call.1} parent=1 // pred_region
      %967 = dma.done [#allocation15], 512
    $region69: #{tpu_custom_call.1} parent=1 // pred_fallthru
      _
    %968 = vsyncpa [#allocation5], 1
    %969 = vsyncpa [#allocation8], 1
    %970 = vsyncpa [#allocation11], 1
    %971 = vsyncpa [#allocation6], 1
    %972 = vsyncpa [#allocation15], 1

// kernel: tpu_custom_call.1
$region0: #{tpu_custom_call.1}
  #allocation0 [shape = 'u32[]', space=smem, size = 0x4, offset = 0x4, fixed_abs, tag = 'smem constant byte address 0x4 - core index']
  #allocation1 [shape = 'u32[144,128]{1,0:T(1,128)}', space=vmem, size = 0x12000, scoped, tag = 'internal scratch']
  #allocation2 [shape = 'f32[2,16,32]{2,1,0:T(8,128)}', space=vmem, size = 0x4000, scoped, tag = 'scratch operand']
  #allocation3 [shape = 'f32[2,16,32]{2,1,0:T(8,128)}', space=vmem, size = 0x4000, scoped, tag = 'scratch operand']
  %s0 = inlined_call_operand.hbm [shape: f32[2,16,32], index: 0, kind: input, shape index: {}]
  %s1 = inlined_call_operand.hbm [shape: f32[1,16,32], index: 1, kind: input, shape index: {}]
  %s2 = inlined_call_operand.hbm [shape: f32[32,32], index: 2, kind: input, shape index: {}]
  %s3 = inlined_call_operand.hbm [shape: f32[32,64], index: 3, kind: input, shape index: {}]
  %s4 = inlined_call_operand.hbm [shape: f32[32,32], index: 4, kind: input, shape index: {}]
  %s5 = inlined_call_operand.vmem [shape: f32[1,32], index: 5, kind: input, shape index: {}]
  %s6 = inlined_call_operand.vmem [shape: f32[1,32], index: 6, kind: input, shape index: {}]
  %s7 = inlined_call_operand.hbm [shape: f32[2,16,32], index: 7, kind: output, shape index: {0}]
  %s8 = inlined_call_operand.hbm [shape: f32[2,1,16,16], index: 8, kind: output, shape index: {1}]
  %9 = xla_tuple %s7, %s8
  %s10 = sld [smem:[#allocation0]]
  $region70: #{tpu_custom_call.1} parent=0
    _
  %s12 = ssub.s32 1, %s10
  %s13 = scalar_select 0, %s12, %s10
  $region1: #{tpu_custom_call.1} parent=0
    #allocation4 [shape = 'u8[16384]{0}', space=vmem, size = 0x4000, scoped, tag = 'input window, operand 0, single buffered']
    #allocation5 [shape = 's32[1]{0}', space=sflag, size = 0x4, scoped, tag = 'scoped memory for tpu_custom_call.1']
    #allocation6 [shape = 's32[1]{0}', space=sflag, size = 0x4, scoped, tag = 'scoped memory for tpu_custom_call.1']
    #allocation7 [shape = 'u8[8192]{0}', space=vmem, size = 0x2000, scoped, tag = 'input window, operand 1, single buffered']
    #allocation8 [shape = 's32[1]{0}', space=sflag, size = 0x4, scoped, tag = 'scoped memory for tpu_custom_call.1']
    #allocation9 [shape = 'u8[16384]{0}', space=vmem, size = 0x4000, scoped, tag = 'input window, operand 2, single buffered']
    #allocation10 [shape = 'u8[16384]{0}', space=vmem, size = 0x4000, scoped, tag = 'input window, operand 3, single buffered']
    #allocation11 [shape = 's32[1]{0}', space=sflag, size = 0x4, scoped, tag = 'scoped memory for tpu_custom_call.1']
    #allocation12 [shape = 'u8[16384]{0}', space=vmem, size = 0x4000, scoped, tag = 'input window, operand 4, single buffered']
    #allocation13 [shape = 'u8[16384]{0}', space=vmem, size = 0x4000, scoped, tag = 'output window, operand 0, single buffered']
    #allocation14 [shape = 'u8[16384]{0}', space=vmem, size = 0x4000, scoped, tag = 'output window, operand 1, single buffered']
    #allocation15 [shape = 's32[1]{0}', space=sflag, size = 0x4, scoped, tag = 'scoped memory for tpu_custom_call.1']
    %14 = vsyncpa [#allocation5], 0
    %15 = vsyncpa [#allocation8], 0
    %16 = vsyncpa [#allocation11], 0
    %17 = vsyncpa [#allocation6], 0
    %18 = vsyncpa [#allocation15], 0
    // Predicated region
    $region2: #{tpu_custom_call.1} parent=1 // pred_check
      _
    $region3: #{tpu_custom_call.1} parent=1 // pred_check_branch
      %20 = sbr.rel (0) target = $region5
    $region4: #{tpu_custom_call.1} parent=1 // pred_region
      %s22 = ssub.s32 512, 512
      %23 = vsyncadd [#allocation5], %s22
      %s24 = sshll.u32 [#allocation4], 4
      %s25 = int_to_ptr.vmem [resolvable:$true] %s24
      %30 = dma.hbm_to_vmem [thread:$0]  %s0, 512, %s25, [#allocation5], 128, 128, 8
    $region5: #{tpu_custom_call.1} parent=1 // pred_fallthru
      _
    // Predicated region
    $region6: #{tpu_custom_call.1} parent=1 // pred_check
      _
    $region7: #{tpu_custom_call.1} parent=1 // pred_check_branch
      %32 = sbr.rel (0) target = $region9
    $region8: #{tpu_custom_call.1} parent=1 // pred_region
      %s34 = ssub.s32 256, 256
      %35 = vsyncadd [#allocation8], %s34
      %s36 = sshll.u32 [#allocation7], 4
      %s37 = int_to_ptr.vmem [resolvable:$true] %s36
      %42 = dma.hbm_to_vmem [thread:$0]  %s1, 256, %s37, [#allocation8], 128, 128, 8
    $region9: #{tpu_custom_call.1} parent=1 // pred_fallthru
      _
    // Predicated region
    $region10: #{tpu_custom_call.1} parent=1 // pred_check
      _
    $region11: #{tpu_custom_call.1} parent=1 // pred_check_branch
      %44 = sbr.rel (0) target = $region13
    $region12: #{tpu_custom_call.1} parent=1 // pred_region
      %s46 = ssub.s32 512, 512
      %47 = vsyncadd [#allocation8], %s46
      %s48 = sshll.u32 [#allocation9], 4
      %s49 = int_to_ptr.vmem [resolvable:$true] %s48
      %54 = dma.hbm_to_vmem [thread:$0]  %s2, 512, %s49, [#allocation8], 128, 128, 8
    $region13: #{tpu_custom_call.1} parent=1 // pred_fallthru
      _
    // Predicated region
    $region14: #{tpu_custom_call.1} parent=1 // pred_check
      _
    $region15: #{tpu_custom_call.1} parent=1 // pred_check_branch
      %56 = sbr.rel (0) target = $region17
    $region16: #{tpu_custom_call.1} parent=1 // pred_region
      %s58 = ssub.s32 512, 512
      %59 = vsyncadd [#allocation11], %s58
      %s60 = sshll.u32 [#allocation10], 4
      %s61 = int_to_ptr.vmem [resolvable:$true] %s60
      %66 = dma.hbm_to_vmem [thread:$0]  %s3, 512, %s61, [#allocation11], 128, 128, 8
    $region17: #{tpu_custom_call.1} parent=1 // pred_fallthru
      _
    // Predicated region
    $region18: #{tpu_custom_call.1} parent=1 // pred_check
      _
    $region19: #{tpu_custom_call.1} parent=1 // pred_check_branch
      %68 = sbr.rel (0) target = $region21
    $region20: #{tpu_custom_call.1} parent=1 // pred_region
      %s70 = ssub.s32 512, 512
      %71 = vsyncadd [#allocation11], %s70
      %s72 = sshll.u32 [#allocation12], 4
      %s73 = int_to_ptr.vmem [resolvable:$true] %s72
      %78 = dma.hbm_to_vmem [thread:$0]  %s4, 512, %s73, [#allocation11], 128, 128, 8
    $region21: #{tpu_custom_call.1} parent=1 // pred_fallthru
      _
    // Predicated region
    $region22: #{tpu_custom_call.1} parent=1 // pred_check
      _
    $region23: #{tpu_custom_call.1} parent=1 // pred_check_branch
      %80 = sbr.rel (0) target = $region25
    $region24: #{tpu_custom_call.1} parent=1 // pred_region
      _
    $region25: #{tpu_custom_call.1} parent=1 // pred_fallthru
      _
    // Predicated region
    $region26: #{tpu_custom_call.1} parent=1 // pred_check
      _
    $region27: #{tpu_custom_call.1} parent=1 // pred_check_branch
      %82 = sbr.rel (0) target = $region29
    $region28: #{tpu_custom_call.1} parent=1 // pred_region
      _
    $region29: #{tpu_custom_call.1} parent=1 // pred_fallthru
      _
    // Predicated region
    $region30: #{tpu_custom_call.1} parent=1 // pred_check
      _
    $region31: #{tpu_custom_call.1} parent=1 // pred_check_branch
      %84 = sbr.rel (0) target = $region33
    $region32: #{tpu_custom_call.1} parent=1 // pred_region
      %85 = dma.done [#allocation5], 512
    $region33: #{tpu_custom_call.1} parent=1 // pred_fallthru
      _
    // Predicated region
    $region34: #{tpu_custom_call.1} parent=1 // pred_check
      _
    $region35: #{tpu_custom_call.1} parent=1 // pred_check_branch
      %87 = sbr.rel (0) target = $region37
    $region36: #{tpu_custom_call.1} parent=1 // pred_region
      %88 = dma.done [#allocation8], 256
    $region37: #{tpu_custom_call.1} parent=1 // pred_fallthru
      _
    // Predicated region
    $region38: #{tpu_custom_call.1} parent=1 // pred_check
      _
    $region39: #{tpu_custom_call.1} parent=1 // pred_check_branch
      %90 = sbr.rel (0) target = $region41
    $region40: #{tpu_custom_call.1} parent=1 // pred_region
      %91 = dma.done [#allocation8], 512
    $region41: #{tpu_custom_call.1} parent=1 // pred_fallthru
      _
    // Predicated region
    $region42: #{tpu_custom_call.1} parent=1 // pred_check
      _
    $region43: #{tpu_custom_call.1} parent=1 // pred_check_branch
      %93 = sbr.rel (0) target = $region45
    $region44: #{tpu_custom_call.1} parent=1 // pred_region
      %94 = dma.done [#allocation11], 512
    $region45: #{tpu_custom_call.1} parent=1 // pred_fallthru
      _
    // Predicated region
    $region46: #{tpu_custom_call.1} parent=1 // pred_check
      _
    $region47: #{tpu_custom_call.1} parent=1 // pred_check_branch
      %96 = sbr.rel (0) target = $region49
    $region48: #{tpu_custom_call.1} parent=1 // pred_region
      %97 = dma.done [#allocation11], 512
    $region49: #{tpu_custom_call.1} parent=1 // pred_fallthru
      _
    %p98 = scmp.eq.s32.totalorder 0, 0
    // Predicated region
    $region50: #{tpu_custom_call.1} parent=1 // pred_check
      %p99 = pneg %p98
    $region51: #{tpu_custom_call.1} parent=1 // pred_check_branch
      %101 = sbr.rel (%p99) target = $region53
    $region52: #{tpu_custom_call.1} parent=1 // pred_region
      %v102 = vld [vmem:[#allocation4] sm:$0xff]
      %v103 = vld [vmem:[#allocation4 + $0x8] sm:$0xff]
      %v104 = vld [vmem:[#allocation4 + $0x10] sm:$0xff]
      %v105 = vld [vmem:[#allocation4 + $0x18] sm:$0xff]
      %v106 = vld [vmem:[#allocation7] sm:$0xff]
      %v107 = vld [vmem:[#allocation7 + $0x8] sm:$0xff]
      %v108 = vadd.f32 %v102, %v106
      %v109 = vadd.f32 %v103, %v107
      %v110 = vadd.f32 %v104, %v106
      %v111 = vadd.f32 %v105, %v107
      %v112 = vld [vmem:[#allocation10] sm:$0xff]
      %v113 = vld [vmem:[#allocation10 + $0x8] sm:$0xff]
      %v114 = vld [vmem:[#allocation10 + $0x10] sm:$0xff]
      %v115 = vld [vmem:[#allocation10 + $0x18] sm:$0xff]
      %vm116 = vcmask 261120
      %v118 = vsel %vm116, %v108, 0
      %v121 = vsel %vm116, %v109, 0
      %v124 = vsel %vm116, %v110, 0
      %v127 = vsel %vm116, %v111, 0
      %129 = vmatprep.subr.mxu0 0.0
      %130 = vmatpush1.msra.mxu0 %v112
      %131 = vmatprep.subr.mxu0 0.0
      %132 = vmatpush1.msra.mxu0 %v113
      %133 = vmatprep.subr.mxu0 0.0
      %134 = vmatpush1.msra.mxu0 %v114
      %135 = vmatprep.subr.mxu0 0.0
      %136 = vmatpush1.msra.mxu0 %v115
      %137 = vmatprep.subr.mxu0 0.0
      %138 = vmatpush1.msra.mxu0 0.0
      %139 = vmatprep.subr.mxu0 0.0
      %140 = vmatpush1.msra.mxu0 0.0
      %141 = vmatprep.subr.mxu0 0.0
      %142 = vmatpush1.msra.mxu0 0.0
      %143 = vmatprep.subr.mxu0 0.0
      %144 = vmatpush1.msra.mxu0 0.0
      %145 = vmatprep.subr.mxu0 0.0
      %146 = vmatpush1.msra.mxu0 0.0
      %147 = vmatprep.subr.mxu0 0.0
      %148 = vmatpush1.msra.mxu0 0.0
      %149 = vmatprep.subr.mxu0 0.0
      %150 = vmatpush1.msra.mxu0 0.0
      %151 = vmatprep.subr.mxu0 0.0
      %152 = vmatpush1.msra.mxu0 0.0
      %153 = vmatprep.subr.mxu0 0.0
      %154 = vmatpush1.msra.mxu0 0.0
      %155 = vmatprep.subr.mxu0 0.0
      %156 = vmatpush1.msra.mxu0 0.0
      %157 = vmatprep.subr.mxu0 0.0
      %158 = vmatpush1.msra.mxu0 0.0
      %159 = vmatprep.subr.mxu0 0.0
      %160 = vmatpush1.msra.mxu0 0.0
      %161 = vmatprep.subr.mxu0 0.0
      %162 = vmatpush1.msra.mxu0 0.0
      %163 = vmatprep.subr.mxu0 0.0
      %164 = vmatpush1.msra.mxu0 0.0
      %165 = vmatprep.subr.mxu0 0.0
      %166 = vmatpush1.msra.mxu0 0.0
      %167 = vmatprep.subr.mxu0 0.0
      %168 = vmatpush1.msra.mxu0 0.0
      %169 = vmatprep.subr.mxu0 0.0
      %170 = vmatpush1.msra.mxu0 0.0
      %171 = vmatprep.subr.mxu0 0.0
      %172 = vmatpush1.msra.mxu0 0.0
      %173 = vmatprep.subr.mxu0 0.0
      %174 = vmatpush1.msra.mxu0 0.0
      %175 = vmatprep.subr.mxu0 0.0
      %176 = vmatpush1.msra.mxu0 0.0
      %177 = vmatprep.subr.mxu0 0.0
      %178 = vmatpush1.msra.mxu0 0.0
      %179 = vmatprep.subr.mxu0 0.0
      %180 = vmatpush1.msra.mxu0 0.0
      %181 = vmatprep.subr.mxu0 0.0
      %182 = vmatpush1.msra.mxu0 0.0
      %183 = vmatprep.subr.mxu0 0.0
      %184 = vmatpush1.msra.mxu0 0.0
      %185 = vmatprep.subr.mxu0 0.0
      %186 = vmatpush1.msra.mxu0 0.0
      %187 = vmatprep.subr.mxu0 0.0
      %188 = vmatpush1.msra.mxu0 0.0
      %189 = vmatprep.subr.mxu0 0.0
      %190 = vmatpush1.msra.mxu0 0.0
      %191 = vmatprep.subr.mxu0 0.0
      %192 = vmatpush1.msra.mxu0 0.0
      %193 = vmatprep.mubr.f32.mxu0 0.0
      %194 = vmatmul.mubr.f32.gmra.mrb[0].mxu0 %v118
      %v195 = vpop.f32.mrb[0].mxu0
      %v196 = vadd.f32 0.0, %v195
      %v197 = vpop.f32.mrb[0].mxu0
      %198 = vmatprep.mubr.f32.mxu0 0.0
      %199 = vmatmul.mubr.f32.gmra.mrb[0].mxu0 %v121
      %v200 = vpop.f32.mrb[0].mxu0
      %v201 = vadd.f32 0.0, %v200
      %v202 = vpop.f32.mrb[0].mxu0
      %203 = vmatprep.mubr.f32.mxu0 0.0
      %204 = vmatmul.mubr.f32.gmra.mrb[0].mxu0 %v124
      %v205 = vpop.f32.mrb[0].mxu0
      %v206 = vadd.f32 0.0, %v205
      %v207 = vpop.f32.mrb[0].mxu0
      %208 = vmatprep.mubr.f32.mxu0 0.0
      %209 = vmatmul.mubr.f32.gmra.mrb[0].mxu0 %v127
      %v210 = vpop.f32.mrb[0].mxu0
      %v211 = vadd.f32 0.0, %v210
      %v212 = vpop.f32.mrb[0].mxu0
      %213 = vdwg.mxu0
      %214 = vst.msk [vmem:[#allocation2] sm:$0xff] %vm116, %v196
      %215 = vst.msk [vmem:[#allocation2 + $0x8] sm:$0xff] %vm116, %v201
      %216 = vst.msk [vmem:[#allocation2 + $0x10] sm:$0xff] %vm116, %v206
      %217 = vst.msk [vmem:[#allocation2 + $0x18] sm:$0xff] %vm116, %v211
      %222 = vrot.lane.b32.xlu0 %v196, 96
      %v223 = vpop.permute.xlu0 %222
      %224 = vrot.lane.b32.xlu0 %v201, 96
      %v225 = vpop.permute.xlu0 %224
      %226 = vrot.lane.b32.xlu0 %v206, 96
      %v227 = vpop.permute.xlu0 %226
      %228 = vrot.lane.b32.xlu0 %v211, 96
      %v229 = vpop.permute.xlu0 %228
      %234 = vst.msk [vmem:[#allocation3] sm:$0xff] %vm116, %v223
      %235 = vst.msk [vmem:[#allocation3 + $0x8] sm:$0xff] %vm116, %v225
      %236 = vst.msk [vmem:[#allocation3 + $0x10] sm:$0xff] %vm116, %v227
      %237 = vst.msk [vmem:[#allocation3 + $0x18] sm:$0xff] %vm116, %v229
    $region53: #{tpu_custom_call.1} parent=1 // pred_fallthru
      _
    %s238 = smul.u32 0, 16
    %s239 = scalar_lea.vmem [#allocation4], %s238
    %v240 = vld [vmem:[%s239] sm:$0xff]
    %v241 = vld [vmem:[%s239 + $0x8] sm:$0xff]
    %v242 = vld [vmem:[%s239 + $0x10] sm:$0xff]
    %v243 = vld [vmem:[%s239 + $0x18] sm:$0xff]
    %s244 = scalar_lea.vmem [#allocation7], %s238
    %v245 = vld [vmem:[%s244] sm:$0xff]
    %v246 = vld [vmem:[%s244 + $0x8] sm:$0xff]
    %v247 = vadd.f32 %v240, %v245
    %v248 = vadd.f32 %v241, %v246
    %v249 = vadd.f32 %v242, %v245
    %v250 = vadd.f32 %v243, %v246
    %v251 = vld [vmem:[#allocation9] sm:$0xff]
    %v252 = vld [vmem:[#allocation9 + $0x8] sm:$0xff]
    %v253 = vld [vmem:[#allocation9 + $0x10] sm:$0xff]
    %v254 = vld [vmem:[#allocation9 + $0x18] sm:$0xff]
    %vm255 = vcmask 261120
    %v257 = vsel %vm255, %v247, 0
    %v260 = vsel %vm255, %v248, 0
    %v263 = vsel %vm255, %v249, 0
    %v266 = vsel %vm255, %v250, 0
    %268 = vmatprep.subr.mxu0 0.0
    %269 = vmatpush1.msra.mxu0 %v251
    %270 = vmatprep.subr.mxu0 0.0
    %271 = vmatpush1.msra.mxu0 %v252
    %272 = vmatprep.subr.mxu0 0.0
    %273 = vmatpush1.msra.mxu0 %v253
    %274 = vmatprep.subr.mxu0 0.0
    %275 = vmatpush1.msra.mxu0 %v254
    %276 = vmatprep.subr.mxu0 0.0
    %277 = vmatpush1.msra.mxu0 0.0
    %278 = vmatprep.subr.mxu0 0.0
    %279 = vmatpush1.msra.mxu0 0.0
    %280 = vmatprep.subr.mxu0 0.0
    %281 = vmatpush1.msra.mxu0 0.0
    %282 = vmatprep.subr.mxu0 0.0
    %283 = vmatpush1.msra.mxu0 0.0
    %284 = vmatprep.subr.mxu0 0.0
    %285 = vmatpush1.msra.mxu0 0.0
    %286 = vmatprep.subr.mxu0 0.0
    %287 = vmatpush1.msra.mxu0 0.0
    %288 = vmatprep.subr.mxu0 0.0
    %289 = vmatpush1.msra.mxu0 0.0
    %290 = vmatprep.subr.mxu0 0.0
    %291 = vmatpush1.msra.mxu0 0.0
    %292 = vmatprep.subr.mxu0 0.0
    %293 = vmatpush1.msra.mxu0 0.0
    %294 = vmatprep.subr.mxu0 0.0
    %295 = vmatpush1.msra.mxu0 0.0
    %296 = vmatprep.subr.mxu0 0.0
    %297 = vmatpush1.msra.mxu0 0.0
    %298 = vmatprep.subr.mxu0 0.0
    %299 = vmatpush1.msra.mxu0 0.0
    %300 = vmatprep.subr.mxu0 0.0
    %301 = vmatpush1.msra.mxu0 0.0
    %302 = vmatprep.subr.mxu0 0.0
    %303 = vmatpush1.msra.mxu0 0.0
    %304 = vmatprep.subr.mxu0 0.0
    %305 = vmatpush1.msra.mxu0 0.0
    %306 = vmatprep.subr.mxu0 0.0
    %307 = vmatpush1.msra.mxu0 0.0
    %308 = vmatprep.subr.mxu0 0.0
    %309 = vmatpush1.msra.mxu0 0.0
    %310 = vmatprep.subr.mxu0 0.0
    %311 = vmatpush1.msra.mxu0 0.0
    %312 = vmatprep.subr.mxu0 0.0
    %313 = vmatpush1.msra.mxu0 0.0
    %314 = vmatprep.subr.mxu0 0.0
    %315 = vmatpush1.msra.mxu0 0.0
    %316 = vmatprep.subr.mxu0 0.0
    %317 = vmatpush1.msra.mxu0 0.0
    %318 = vmatprep.subr.mxu0 0.0
    %319 = vmatpush1.msra.mxu0 0.0
    %320 = vmatprep.subr.mxu0 0.0
    %321 = vmatpush1.msra.mxu0 0.0
    %322 = vmatprep.subr.mxu0 0.0
    %323 = vmatpush1.msra.mxu0 0.0
    %324 = vmatprep.subr.mxu0 0.0
    %325 = vmatpush1.msra.mxu0 0.0
    %326 = vmatprep.subr.mxu0 0.0
    %327 = vmatpush1.msra.mxu0 0.0
    %328 = vmatprep.subr.mxu0 0.0
    %329 = vmatpush1.msra.mxu0 0.0
    %330 = vmatprep.subr.mxu0 0.0
    %331 = vmatpush1.msra.mxu0 0.0
    %332 = vmatprep.mubr.f32.mxu0 0.0
    %333 = vmatmul.mubr.f32.gmra.mrb[0].mxu0 %v257
    %v334 = vpop.f32.mrb[0].mxu0
    %v335 = vadd.f32 0.0, %v334
    %v336 = vpop.f32.mrb[0].mxu0
    %337 = vmatprep.mubr.f32.mxu0 0.0
    %338 = vmatmul.mubr.f32.gmra.mrb[0].mxu0 %v260
    %v339 = vpop.f32.mrb[0].mxu0
    %v340 = vadd.f32 0.0, %v339
    %v341 = vpop.f32.mrb[0].mxu0
    %342 = vmatprep.mubr.f32.mxu0 0.0
    %343 = vmatmul.mubr.f32.gmra.mrb[0].mxu0 %v263
    %v344 = vpop.f32.mrb[0].mxu0
    %v345 = vadd.f32 0.0, %v344
    %v346 = vpop.f32.mrb[0].mxu0
    %347 = vmatprep.mubr.f32.mxu0 0.0
    %348 = vmatmul.mubr.f32.gmra.mrb[0].mxu0 %v266
    %v349 = vpop.f32.mrb[0].mxu0
    %v350 = vadd.f32 0.0, %v349
    %v351 = vpop.f32.mrb[0].mxu0
    %352 = vdwg.mxu0
    %v353 = vld [vmem:[#allocation2] sm:$0xff]
    %v354 = vld [vmem:[#allocation2 + $0x8] sm:$0xff]
    %v355 = vld [vmem:[#allocation2 + $0x10] sm:$0xff]
    %v356 = vld [vmem:[#allocation2 + $0x18] sm:$0xff]
    %v357 = vld [vmem:[#allocation3] sm:$0xff]
    %v358 = vld [vmem:[#allocation3 + $0x8] sm:$0xff]
    %v359 = vld [vmem:[#allocation3 + $0x10] sm:$0xff]
    %v360 = vld [vmem:[#allocation3 + $0x18] sm:$0xff]
    %v362 = vsel %vm255, %v335, 0
    %v365 = vsel %vm255, %v340, 0
    %v368 = vsel %vm255, %v353, 0
    %v371 = vsel %vm255, %v354, 0
    %373 = vmatprep.subr.mxu0 0.0
    %374 = vmatpush1.xpose.msra.mxu0 %v368
    %375 = vmatprep.subr.mxu0 0.0
    %376 = vmatpush1.xpose.msra.mxu0 %v371
    %377 = vmatprep.subr.mxu0 0.0
    %378 = vmatpush1.xpose.msra.mxu0 0.0
    %379 = vmatprep.subr.mxu0 0.0
    %380 = vmatpush1.xpose.msra.mxu0 0.0
    %381 = vmatprep.subr.mxu0 0.0
    %382 = vmatpush1.xpose.msra.mxu0 0.0
    %383 = vmatprep.subr.mxu0 0.0
    %384 = vmatpush1.xpose.msra.mxu0 0.0
    %385 = vmatprep.subr.mxu0 0.0
    %386 = vmatpush1.xpose.msra.mxu0 0.0
    %387 = vmatprep.subr.mxu0 0.0
    %388 = vmatpush1.xpose.msra.mxu0 0.0
    %389 = vmatprep.subr.mxu0 0.0
    %390 = vmatpush1.xpose.msra.mxu0 0.0
    %391 = vmatprep.subr.mxu0 0.0
    %392 = vmatpush1.xpose.msra.mxu0 0.0
    %393 = vmatprep.subr.mxu0 0.0
    %394 = vmatpush1.xpose.msra.mxu0 0.0
    %395 = vmatprep.subr.mxu0 0.0
    %396 = vmatpush1.xpose.msra.mxu0 0.0
    %397 = vmatprep.subr.mxu0 0.0
    %398 = vmatpush1.xpose.msra.mxu0 0.0
    %399 = vmatprep.subr.mxu0 0.0
    %400 = vmatpush1.xpose.msra.mxu0 0.0
    %401 = vmatprep.subr.mxu0 0.0
    %402 = vmatpush1.xpose.msra.mxu0 0.0
    %403 = vmatprep.subr.mxu0 0.0
    %404 = vmatpush1.xpose.msra.mxu0 0.0
    %405 = vmatprep.subr.mxu0 0.0
    %406 = vmatpush1.xpose.msra.mxu0 0.0
    %407 = vmatprep.subr.mxu0 0.0
    %408 = vmatpush1.xpose.msra.mxu0 0.0
    %409 = vmatprep.subr.mxu0 0.0
    %410 = vmatpush1.xpose.msra.mxu0 0.0
    %411 = vmatprep.subr.mxu0 0.0
    %412 = vmatpush1.xpose.msra.mxu0 0.0
    %413 = vmatprep.subr.mxu0 0.0
    %414 = vmatpush1.xpose.msra.mxu0 0.0
    %415 = vmatprep.subr.mxu0 0.0
    %416 = vmatpush1.xpose.msra.mxu0 0.0
    %417 = vmatprep.subr.mxu0 0.0
    %418 = vmatpush1.xpose.msra.mxu0 0.0
    %419 = vmatprep.subr.mxu0 0.0
    %420 = vmatpush1.xpose.msra.mxu0 0.0
    %421 = vmatprep.subr.mxu0 0.0
    %422 = vmatpush1.xpose.msra.mxu0 0.0
    %423 = vmatprep.subr.mxu0 0.0
    %424 = vmatpush1.xpose.msra.mxu0 0.0
    %425 = vmatprep.subr.mxu0 0.0
    %426 = vmatpush1.xpose.msra.mxu0 0.0
    %427 = vmatprep.subr.mxu0 0.0
    %428 = vmatpush1.xpose.msra.mxu0 0.0
    %429 = vmatprep.subr.mxu0 0.0
    %430 = vmatpush1.xpose.msra.mxu0 0.0
    %431 = vmatprep.subr.mxu0 0.0
    %432 = vmatpush1.xpose.msra.mxu0 0.0
    %433 = vmatprep.subr.mxu0 0.0
    %434 = vmatpush1.xpose.msra.mxu0 0.0
    %435 = vmatprep.subr.mxu0 0.0
    %436 = vmatpush1.xpose.msra.mxu0 0.0
    %437 = vmatprep.mubr.f32.mxu0 0.0
    %438 = vmatmul.mubr.f32.gmra.mrb[0].mxu0 %v362
    %v439 = vpop.f32.mrb[0].mxu0
    %v440 = vadd.f32 0.0, %v439
    %v441 = vpop.f32.mrb[0].mxu0
    %442 = vmatprep.mubr.f32.mxu0 0.0
    %443 = vmatmul.mubr.f32.gmra.mrb[0].mxu0 %v365
    %v444 = vpop.f32.mrb[0].mxu0
    %v445 = vadd.f32 0.0, %v444
    %v446 = vpop.f32.mrb[0].mxu0
    %447 = vdwg.mxu0
    %v449 = vsel %vm255, %v345, 0
    %v452 = vsel %vm255, %v350, 0
    %v455 = vsel %vm255, %v355, 0
    %v458 = vsel %vm255, %v356, 0
    %460 = vmatprep.subr.mxu0 0.0
    %461 = vmatpush1.xpose.msra.mxu0 %v455
    %462 = vmatprep.subr.mxu0 0.0
    %463 = vmatpush1.xpose.msra.mxu0 %v458
    %464 = vmatprep.subr.mxu0 0.0
    %465 = vmatpush1.xpose.msra.mxu0 0.0
    %466 = vmatprep.subr.mxu0 0.0
    %467 = vmatpush1.xpose.msra.mxu0 0.0
    %468 = vmatprep.subr.mxu0 0.0
    %469 = vmatpush1.xpose.msra.mxu0 0.0
    %470 = vmatprep.subr.mxu0 0.0
    %471 = vmatpush1.xpose.msra.mxu0 0.0
    %472 = vmatprep.subr.mxu0 0.0
    %473 = vmatpush1.xpose.msra.mxu0 0.0
    %474 = vmatprep.subr.mxu0 0.0
    %475 = vmatpush1.xpose.msra.mxu0 0.0
    %476 = vmatprep.subr.mxu0 0.0
    %477 = vmatpush1.xpose.msra.mxu0 0.0
    %478 = vmatprep.subr.mxu0 0.0
    %479 = vmatpush1.xpose.msra.mxu0 0.0
    %480 = vmatprep.subr.mxu0 0.0
    %481 = vmatpush1.xpose.msra.mxu0 0.0
    %482 = vmatprep.subr.mxu0 0.0
    %483 = vmatpush1.xpose.msra.mxu0 0.0
    %484 = vmatprep.subr.mxu0 0.0
    %485 = vmatpush1.xpose.msra.mxu0 0.0
    %486 = vmatprep.subr.mxu0 0.0
    %487 = vmatpush1.xpose.msra.mxu0 0.0
    %488 = vmatprep.subr.mxu0 0.0
    %489 = vmatpush1.xpose.msra.mxu0 0.0
    %490 = vmatprep.subr.mxu0 0.0
    %491 = vmatpush1.xpose.msra.mxu0 0.0
    %492 = vmatprep.subr.mxu0 0.0
    %493 = vmatpush1.xpose.msra.mxu0 0.0
    %494 = vmatprep.subr.mxu0 0.0
    %495 = vmatpush1.xpose.msra.mxu0 0.0
    %496 = vmatprep.subr.mxu0 0.0
    %497 = vmatpush1.xpose.msra.mxu0 0.0
    %498 = vmatprep.subr.mxu0 0.0
    %499 = vmatpush1.xpose.msra.mxu0 0.0
    %500 = vmatprep.subr.mxu0 0.0
    %501 = vmatpush1.xpose.msra.mxu0 0.0
    %502 = vmatprep.subr.mxu0 0.0
    %503 = vmatpush1.xpose.msra.mxu0 0.0
    %504 = vmatprep.subr.mxu0 0.0
    %505 = vmatpush1.xpose.msra.mxu0 0.0
    %506 = vmatprep.subr.mxu0 0.0
    %507 = vmatpush1.xpose.msra.mxu0 0.0
    %508 = vmatprep.subr.mxu0 0.0
    %509 = vmatpush1.xpose.msra.mxu0 0.0
    %510 = vmatprep.subr.mxu0 0.0
    %511 = vmatpush1.xpose.msra.mxu0 0.0
    %512 = vmatprep.subr.mxu0 0.0
    %513 = vmatpush1.xpose.msra.mxu0 0.0
    %514 = vmatprep.subr.mxu0 0.0
    %515 = vmatpush1.xpose.msra.mxu0 0.0
    %516 = vmatprep.subr.mxu0 0.0
    %517 = vmatpush1.xpose.msra.mxu0 0.0
    %518 = vmatprep.subr.mxu0 0.0
    %519 = vmatpush1.xpose.msra.mxu0 0.0
    %520 = vmatprep.subr.mxu0 0.0
    %521 = vmatpush1.xpose.msra.mxu0 0.0
    %522 = vmatprep.subr.mxu0 0.0
    %523 = vmatpush1.xpose.msra.mxu0 0.0
    %524 = vmatprep.mubr.f32.mxu0 0.0
    %525 = vmatmul.mubr.f32.gmra.mrb[0].mxu0 %v449
    %v526 = vpop.f32.mrb[0].mxu0
    %v527 = vadd.f32 0.0, %v526
    %v528 = vpop.f32.mrb[0].mxu0
    %529 = vmatprep.mubr.f32.mxu0 0.0
    %530 = vmatmul.mubr.f32.gmra.mrb[0].mxu0 %v452
    %v531 = vpop.f32.mrb[0].mxu0
    %v532 = vadd.f32 0.0, %v531
    %v533 = vpop.f32.mrb[0].mxu0
    %534 = vdwg.mxu0
    %vm535 = vcmask 130048
    %v536 = vsel %vm535, %v440, -inf
    %537 = vmax.xlane.f32.xlu0 %v536
    %v538 = vpop.xlane.xlu0 %537
    %v539 = vsel %vm535, %v445, -inf
    %540 = vmax.xlane.f32.xlu0 %v539
    %v541 = vpop.xlane.xlu0 %540
    %v542 = vsel %vm535, %v527, -inf
    %543 = vmax.xlane.f32.xlu0 %v542
    %v544 = vpop.xlane.xlu0 %543
    %v545 = vsel %vm535, %v532, -inf
    %546 = vmax.xlane.f32.xlu0 %v545
    %v547 = vpop.xlane.xlu0 %546
    %v548 = vsub.f32 %v440, %v538
    %v549 = vsub.f32 %v445, %v541
    %v550 = vsub.f32 %v527, %v544
    %v551 = vsub.f32 %v532, %v547
    %v552 = vmul.f32 %v548, 1.442695
    %v553 = vpow.pop %v552
    %v554 = vmul.f32 %v549, 1.442695
    %v555 = vpow.pop %v554
    %v556 = vmul.f32 %v550, 1.442695
    %v557 = vpow.pop %v556
    %v558 = vmul.f32 %v551, 1.442695
    %v559 = vpow.pop %v558
    %v560 = vsel %vm535, %v553, 0.0
    %561 = vadd.xlane.f32.xlu0 %v560
    %v562 = vpop.xlane.xlu0 %561
    %v563 = vsel %vm535, %v555, 0.0
    %564 = vadd.xlane.f32.xlu0 %v563
    %v565 = vpop.xlane.xlu0 %564
    %v566 = vsel %vm535, %v557, 0.0
    %567 = vadd.xlane.f32.xlu0 %v566
    %v568 = vpop.xlane.xlu0 %567
    %v569 = vsel %vm535, %v559, 0.0
    %570 = vadd.xlane.f32.xlu0 %v569
    %v571 = vpop.xlane.xlu0 %570
    %v572 = vrcp.pop %v562
    %v573 = vrcp.pop %v565
    %v574 = vrcp.pop %v568
    %v575 = vrcp.pop %v571
    %v576 = vmul.f32 %v562, %v572
    %v577 = vmul.f32 %v565, %v573
    %v578 = vmul.f32 %v568, %v574
    %v579 = vmul.f32 %v571, %v575
    %v580 = vsub.f32 2.0, %v576
    %v581 = vsub.f32 2.0, %v577
    %v582 = vsub.f32 2.0, %v578
    %v583 = vsub.f32 2.0, %v579
    %v584 = vmul.f32 %v572, %v580
    %v585 = vmul.f32 %v573, %v581
    %v586 = vmul.f32 %v574, %v582
    %v587 = vmul.f32 %v575, %v583
    %v588 = vmul.f32 %v553, %v584
    %v589 = vmul.f32 %v555, %v585
    %v590 = vmul.f32 %v557, %v586
    %v591 = vmul.f32 %v559, %v587
    %592 = vst.msk [vmem:[#allocation14] sm:$0xff] %vm535, %v588
    %593 = vst.msk [vmem:[#allocation14 + $0x8] sm:$0xff] %vm535, %v589
    %594 = vst.msk [vmem:[#allocation14 + $0x10] sm:$0xff] %vm535, %v590
    %595 = vst.msk [vmem:[#allocation14 + $0x18] sm:$0xff] %vm535, %v591
    %v597 = vsel %vm535, %v588, 0
    %v600 = vsel %vm535, %v589, 0
    %602 = vmatprep.subr.mxu0 0.0
    %603 = vmatpush1.msra.mxu0 %v357
    %604 = vmatprep.subr.mxu0 0.0
    %605 = vmatpush1.msra.mxu0 %v358
    %606 = vmatprep.subr.mxu0 0.0
    %607 = vmatpush1.msra.mxu0 0.0
    %608 = vmatprep.subr.mxu0 0.0
    %609 = vmatpush1.msra.mxu0 0.0
    %610 = vmatprep.subr.mxu0 0.0
    %611 = vmatpush1.msra.mxu0 0.0
    %612 = vmatprep.subr.mxu0 0.0
    %613 = vmatpush1.msra.mxu0 0.0
    %614 = vmatprep.subr.mxu0 0.0
    %615 = vmatpush1.msra.mxu0 0.0
    %616 = vmatprep.subr.mxu0 0.0
    %617 = vmatpush1.msra.mxu0 0.0
    %618 = vmatprep.subr.mxu0 0.0
    %619 = vmatpush1.msra.mxu0 0.0
    %620 = vmatprep.subr.mxu0 0.0
    %621 = vmatpush1.msra.mxu0 0.0
    %622 = vmatprep.subr.mxu0 0.0
    %623 = vmatpush1.msra.mxu0 0.0
    %624 = vmatprep.subr.mxu0 0.0
    %625 = vmatpush1.msra.mxu0 0.0
    %626 = vmatprep.subr.mxu0 0.0
    %627 = vmatpush1.msra.mxu0 0.0
    %628 = vmatprep.subr.mxu0 0.0
    %629 = vmatpush1.msra.mxu0 0.0
    %630 = vmatprep.subr.mxu0 0.0
    %631 = vmatpush1.msra.mxu0 0.0
    %632 = vmatprep.subr.mxu0 0.0
    %633 = vmatpush1.msra.mxu0 0.0
    %634 = vmatprep.subr.mxu0 0.0
    %635 = vmatpush1.msra.mxu0 0.0
    %636 = vmatprep.subr.mxu0 0.0
    %637 = vmatpush1.msra.mxu0 0.0
    %638 = vmatprep.subr.mxu0 0.0
    %639 = vmatpush1.msra.mxu0 0.0
    %640 = vmatprep.subr.mxu0 0.0
    %641 = vmatpush1.msra.mxu0 0.0
    %642 = vmatprep.subr.mxu0 0.0
    %643 = vmatpush1.msra.mxu0 0.0
    %644 = vmatprep.subr.mxu0 0.0
    %645 = vmatpush1.msra.mxu0 0.0
    %646 = vmatprep.subr.mxu0 0.0
    %647 = vmatpush1.msra.mxu0 0.0
    %648 = vmatprep.subr.mxu0 0.0
    %649 = vmatpush1.msra.mxu0 0.0
    %650 = vmatprep.subr.mxu0 0.0
    %651 = vmatpush1.msra.mxu0 0.0
    %652 = vmatprep.subr.mxu0 0.0
    %653 = vmatpush1.msra.mxu0 0.0
    %654 = vmatprep.subr.mxu0 0.0
    %655 = vmatpush1.msra.mxu0 0.0
    %656 = vmatprep.subr.mxu0 0.0
    %657 = vmatpush1.msra.mxu0 0.0
    %658 = vmatprep.subr.mxu0 0.0
    %659 = vmatpush1.msra.mxu0 0.0
    %660 = vmatprep.subr.mxu0 0.0
    %661 = vmatpush1.msra.mxu0 0.0
    %662 = vmatprep.subr.mxu0 0.0
    %663 = vmatpush1.msra.mxu0 0.0
    %664 = vmatprep.subr.mxu0 0.0
    %665 = vmatpush1.msra.mxu0 0.0
    %666 = vmatprep.mubr.f32.mxu0 0.0
    %667 = vmatmul.mubr.f32.gmra.mrb[0].mxu0 %v597
    %v668 = vpop.f32.mrb[0].mxu0
    %v669 = vadd.f32 0.0, %v668
    %v670 = vpop.f32.mrb[0].mxu0
    %671 = vmatprep.mubr.f32.mxu0 0.0
    %672 = vmatmul.mubr.f32.gmra.mrb[0].mxu0 %v600
    %v673 = vpop.f32.mrb[0].mxu0
    %v674 = vadd.f32 0.0, %v673
    %v675 = vpop.f32.mrb[0].mxu0
    %676 = vdwg.mxu0
    %v678 = vsel %vm535, %v590, 0
    %v681 = vsel %vm535, %v591, 0
    %683 = vmatprep.subr.mxu0 0.0
    %684 = vmatpush1.msra.mxu0 %v359
    %685 = vmatprep.subr.mxu0 0.0
    %686 = vmatpush1.msra.mxu0 %v360
    %687 = vmatprep.subr.mxu0 0.0
    %688 = vmatpush1.msra.mxu0 0.0
    %689 = vmatprep.subr.mxu0 0.0
    %690 = vmatpush1.msra.mxu0 0.0
    %691 = vmatprep.subr.mxu0 0.0
    %692 = vmatpush1.msra.mxu0 0.0
    %693 = vmatprep.subr.mxu0 0.0
    %694 = vmatpush1.msra.mxu0 0.0
    %695 = vmatprep.subr.mxu0 0.0
    %696 = vmatpush1.msra.mxu0 0.0
    %697 = vmatprep.subr.mxu0 0.0
    %698 = vmatpush1.msra.mxu0 0.0
    %699 = vmatprep.subr.mxu0 0.0
    %700 = vmatpush1.msra.mxu0 0.0
    %701 = vmatprep.subr.mxu0 0.0
    %702 = vmatpush1.msra.mxu0 0.0
    %703 = vmatprep.subr.mxu0 0.0
    %704 = vmatpush1.msra.mxu0 0.0
    %705 = vmatprep.subr.mxu0 0.0
    %706 = vmatpush1.msra.mxu0 0.0
    %707 = vmatprep.subr.mxu0 0.0
    %708 = vmatpush1.msra.mxu0 0.0
    %709 = vmatprep.subr.mxu0 0.0
    %710 = vmatpush1.msra.mxu0 0.0
    %711 = vmatprep.subr.mxu0 0.0
    %712 = vmatpush1.msra.mxu0 0.0
    %713 = vmatprep.subr.mxu0 0.0
    %714 = vmatpush1.msra.mxu0 0.0
    %715 = vmatprep.subr.mxu0 0.0
    %716 = vmatpush1.msra.mxu0 0.0
    %717 = vmatprep.subr.mxu0 0.0
    %718 = vmatpush1.msra.mxu0 0.0
    %719 = vmatprep.subr.mxu0 0.0
    %720 = vmatpush1.msra.mxu0 0.0
    %721 = vmatprep.subr.mxu0 0.0
    %722 = vmatpush1.msra.mxu0 0.0
    %723 = vmatprep.subr.mxu0 0.0
    %724 = vmatpush1.msra.mxu0 0.0
    %725 = vmatprep.subr.mxu0 0.0
    %726 = vmatpush1.msra.mxu0 0.0
    %727 = vmatprep.subr.mxu0 0.0
    %728 = vmatpush1.msra.mxu0 0.0
    %729 = vmatprep.subr.mxu0 0.0
    %730 = vmatpush1.msra.mxu0 0.0
    %731 = vmatprep.subr.mxu0 0.0
    %732 = vmatpush1.msra.mxu0 0.0
    %733 = vmatprep.subr.mxu0 0.0
    %734 = vmatpush1.msra.mxu0 0.0
    %735 = vmatprep.subr.mxu0 0.0
    %736 = vmatpush1.msra.mxu0 0.0
    %737 = vmatprep.subr.mxu0 0.0
    %738 = vmatpush1.msra.mxu0 0.0
    %739 = vmatprep.subr.mxu0 0.0
    %740 = vmatpush1.msra.mxu0 0.0
    %741 = vmatprep.subr.mxu0 0.0
    %742 = vmatpush1.msra.mxu0 0.0
    %743 = vmatprep.subr.mxu0 0.0
    %744 = vmatpush1.msra.mxu0 0.0
    %745 = vmatprep.subr.mxu0 0.0
    %746 = vmatpush1.msra.mxu0 0.0
    %747 = vmatprep.mubr.f32.mxu0 0.0
    %748 = vmatmul.mubr.f32.gmra.mrb[0].mxu0 %v678
    %v749 = vpop.f32.mrb[0].mxu0
    %v750 = vadd.f32 0.0, %v749
    %v751 = vpop.f32.mrb[0].mxu0
    %752 = vmatprep.mubr.f32.mxu0 0.0
    %753 = vmatmul.mubr.f32.gmra.mrb[0].mxu0 %v681
    %v754 = vpop.f32.mrb[0].mxu0
    %v755 = vadd.f32 0.0, %v754
    %v756 = vpop.f32.mrb[0].mxu0
    %757 = vdwg.mxu0
    %v758 = vld [vmem:[#allocation12] sm:$0xff]
    %v759 = vld [vmem:[#allocation12 + $0x8] sm:$0xff]
    %v760 = vld [vmem:[#allocation12 + $0x10] sm:$0xff]
    %v761 = vld [vmem:[#allocation12 + $0x18] sm:$0xff]
    %v763 = vsel %vm255, %v669, 0
    %v766 = vsel %vm255, %v674, 0
    %v769 = vsel %vm255, %v750, 0
    %v772 = vsel %vm255, %v755, 0
    %774 = vmatprep.subr.mxu0 0.0
    %775 = vmatpush1.msra.mxu0 %v758
    %776 = vmatprep.subr.mxu0 0.0
    %777 = vmatpush1.msra.mxu0 %v759
    %778 = vmatprep.subr.mxu0 0.0
    %779 = vmatpush1.msra.mxu0 %v760
    %780 = vmatprep.subr.mxu0 0.0
    %781 = vmatpush1.msra.mxu0 %v761
    %782 = vmatprep.subr.mxu0 0.0
    %783 = vmatpush1.msra.mxu0 0.0
    %784 = vmatprep.subr.mxu0 0.0
    %785 = vmatpush1.msra.mxu0 0.0
    %786 = vmatprep.subr.mxu0 0.0
    %787 = vmatpush1.msra.mxu0 0.0
    %788 = vmatprep.subr.mxu0 0.0
    %789 = vmatpush1.msra.mxu0 0.0
    %790 = vmatprep.subr.mxu0 0.0
    %791 = vmatpush1.msra.mxu0 0.0
    %792 = vmatprep.subr.mxu0 0.0
    %793 = vmatpush1.msra.mxu0 0.0
    %794 = vmatprep.subr.mxu0 0.0
    %795 = vmatpush1.msra.mxu0 0.0
    %796 = vmatprep.subr.mxu0 0.0
    %797 = vmatpush1.msra.mxu0 0.0
    %798 = vmatprep.subr.mxu0 0.0
    %799 = vmatpush1.msra.mxu0 0.0
    %800 = vmatprep.subr.mxu0 0.0
    %801 = vmatpush1.msra.mxu0 0.0
    %802 = vmatprep.subr.mxu0 0.0
    %803 = vmatpush1.msra.mxu0 0.0
    %804 = vmatprep.subr.mxu0 0.0
    %805 = vmatpush1.msra.mxu0 0.0
    %806 = vmatprep.subr.mxu0 0.0
    %807 = vmatpush1.msra.mxu0 0.0
    %808 = vmatprep.subr.mxu0 0.0
    %809 = vmatpush1.msra.mxu0 0.0
    %810 = vmatprep.subr.mxu0 0.0
    %811 = vmatpush1.msra.mxu0 0.0
    %812 = vmatprep.subr.mxu0 0.0
    %813 = vmatpush1.msra.mxu0 0.0
    %814 = vmatprep.subr.mxu0 0.0
    %815 = vmatpush1.msra.mxu0 0.0
    %816 = vmatprep.subr.mxu0 0.0
    %817 = vmatpush1.msra.mxu0 0.0
    %818 = vmatprep.subr.mxu0 0.0
    %819 = vmatpush1.msra.mxu0 0.0
    %820 = vmatprep.subr.mxu0 0.0
    %821 = vmatpush1.msra.mxu0 0.0
    %822 = vmatprep.subr.mxu0 0.0
    %823 = vmatpush1.msra.mxu0 0.0
    %824 = vmatprep.subr.mxu0 0.0
    %825 = vmatpush1.msra.mxu0 0.0
    %826 = vmatprep.subr.mxu0 0.0
    %827 = vmatpush1.msra.mxu0 0.0
    %828 = vmatprep.subr.mxu0 0.0
    %829 = vmatpush1.msra.mxu0 0.0
    %830 = vmatprep.subr.mxu0 0.0
    %831 = vmatpush1.msra.mxu0 0.0
    %832 = vmatprep.subr.mxu0 0.0
    %833 = vmatpush1.msra.mxu0 0.0
    %834 = vmatprep.subr.mxu0 0.0
    %835 = vmatpush1.msra.mxu0 0.0
    %836 = vmatprep.subr.mxu0 0.0
    %837 = vmatpush1.msra.mxu0 0.0
    %838 = vmatprep.mubr.f32.mxu0 0.0
    %839 = vmatmul.mubr.f32.gmra.mrb[0].mxu0 %v763
    %v840 = vpop.f32.mrb[0].mxu0
    %v841 = vadd.f32 %v247, %v840
    %v842 = vpop.f32.mrb[0].mxu0
    %843 = vmatprep.mubr.f32.mxu0 0.0
    %844 = vmatmul.mubr.f32.gmra.mrb[0].mxu0 %v766
    %v845 = vpop.f32.mrb[0].mxu0
    %v846 = vadd.f32 %v248, %v845
    %v847 = vpop.f32.mrb[0].mxu0
    %848 = vmatprep.mubr.f32.mxu0 0.0
    %849 = vmatmul.mubr.f32.gmra.mrb[0].mxu0 %v769
    %v850 = vpop.f32.mrb[0].mxu0
    %v851 = vadd.f32 %v249, %v850
    %v852 = vpop.f32.mrb[0].mxu0
    %853 = vmatprep.mubr.f32.mxu0 0.0
    %854 = vmatmul.mubr.f32.gmra.mrb[0].mxu0 %v772
    %v855 = vpop.f32.mrb[0].mxu0
    %v856 = vadd.f32 %v250, %v855
    %v857 = vpop.f32.mrb[0].mxu0
    %858 = vdwg.mxu0
    %v859 = vsel %vm255, %v841, 0.0
    %860 = vadd.xlane.f32.xlu0 %v859
    %v861 = vpop.xlane.xlu0 %860
    %v862 = vsel %vm255, %v846, 0.0
    %863 = vadd.xlane.f32.xlu0 %v862
    %v864 = vpop.xlane.xlu0 %863
    %v865 = vsel %vm255, %v851, 0.0
    %866 = vadd.xlane.f32.xlu0 %v865
    %v867 = vpop.xlane.xlu0 %866
    %v868 = vsel %vm255, %v856, 0.0
    %869 = vadd.xlane.f32.xlu0 %v868
    %v870 = vpop.xlane.xlu0 %869
    %v871 = vrcp.pop 32.0
    %v872 = vmul.f32 %v861, %v871
    %v873 = vmul.f32 %v864, %v871
    %v874 = vmul.f32 %v867, %v871
    %v875 = vmul.f32 %v870, %v871
    %v876 = vsub.f32 %v841, %v872
    %v877 = vsub.f32 %v846, %v873
    %v878 = vsub.f32 %v851, %v874
    %v879 = vsub.f32 %v856, %v875
    %v880 = vmul.f32 %v876, %v876
    %v881 = vmul.f32 %v877, %v877
    %v882 = vmul.f32 %v878, %v878
    %v883 = vmul.f32 %v879, %v879
    %v884 = vsel %vm255, %v880, 0.0
    %885 = vadd.xlane.f32.xlu0 %v884
    %v886 = vpop.xlane.xlu0 %885
    %v887 = vsel %vm255, %v881, 0.0
    %888 = vadd.xlane.f32.xlu0 %v887
    %v889 = vpop.xlane.xlu0 %888
    %v890 = vsel %vm255, %v882, 0.0
    %891 = vadd.xlane.f32.xlu0 %v890
    %v892 = vpop.xlane.xlu0 %891
    %v893 = vsel %vm255, %v883, 0.0
    %894 = vadd.xlane.f32.xlu0 %v893
    %v895 = vpop.xlane.xlu0 %894
    %v896 = vmul.f32 %v886, %v871
    %v897 = vmul.f32 %v889, %v871
    %v898 = vmul.f32 %v892, %v871
    %v899 = vmul.f32 %v895, %v871
    %v900 = vadd.f32 %v896, 1e-06
    %v901 = vadd.f32 %v897, 1e-06
    %v902 = vadd.f32 %v898, 1e-06
    %v903 = vadd.f32 %v899, 1e-06
    %v904 = vrsqrt.pop %v900
    %v905 = vrsqrt.pop %v901
    %v906 = vrsqrt.pop %v902
    %v907 = vrsqrt.pop %v903
    %v908 = vmul.f32 %v876, %v904
    %v909 = vmul.f32 %v877, %v905
    %v910 = vmul.f32 %v878, %v906
    %v911 = vmul.f32 %v879, %v907
    %v912 = vld [vmem:[%s5] sm:$0x1]
    %v914 = vlaneseq
    %v915 = vshrl.u32 %v914, 7
    %v916 = vsub.s32 0, %v915
    %v917 = vrot.slane %v912, %v916
    %v919 = vmul.f32 %v908, %v917
    %v920 = vmul.f32 %v909, %v917
    %v921 = vmul.f32 %v910, %v917
    %v922 = vmul.f32 %v911, %v917
    %v923 = vld [vmem:[%s6] sm:$0x1]
    %v925 = vlaneseq
    %v926 = vshrl.u32 %v925, 7
    %v927 = vsub.s32 0, %v926
    %v928 = vrot.slane %v923, %v927
    %v930 = vadd.f32 %v919, %v928
    %v931 = vadd.f32 %v920, %v928
    %v932 = vadd.f32 %v921, %v928
    %v933 = vadd.f32 %v922, %v928
    %934 = vst.msk [vmem:[#allocation13] sm:$0xff] %vm255, %v930
    %935 = vst.msk [vmem:[#allocation13 + $0x8] sm:$0xff] %vm255, %v931
    %936 = vst.msk [vmem:[#allocation13 + $0x10] sm:$0xff] %vm255, %v932
    %937 = vst.msk [vmem:[#allocation13 + $0x18] sm:$0xff] %vm255, %v933
    // Predicated region
    $region54: #{tpu_custom_call.1} parent=1 // pred_check
      _
    $region55: #{tpu_custom_call.1} parent=1 // pred_check_branch
      %939 = sbr.rel (0) target = $region57
    $region56: #{tpu_custom_call.1} parent=1 // pred_region
      %s941 = ssub.s32 512, 512
      %942 = vsyncadd [#allocation6], %s941
      %s943 = sshll.u32 [#allocation13], 4
      %s944 = int_to_ptr.vmem [resolvable:$true] %s943
      %949 = dma.vmem_to_hbm [thread:$0]  %s944, 512, %s7, [#allocation6], 128, 128, 8
    $region57: #{tpu_custom_call.1} parent=1 // pred_fallthru
      _
    // Predicated region
    $region58: #{tpu_custom_call.1} parent=1 // pred_check
      _
    $region59: #{tpu_custom_call.1} parent=1 // pred_check_branch
      %951 = sbr.rel (0) target = $region61
    $region60: #{tpu_custom_call.1} parent=1 // pred_region
      %s953 = ssub.s32 512, 512
      %954 = vsyncadd [#allocation15], %s953
      %s955 = sshll.u32 [#allocation14], 4
      %s956 = int_to_ptr.vmem [resolvable:$true] %s955
      %961 = dma.vmem_to_hbm [thread:$0]  %s956, 512, %s8, [#allocation15], 128, 128, 8
    $region61: #{tpu_custom_call.1} parent=1 // pred_fallthru
      _
    // Predicated region
    $region62: #{tpu_custom_call.1} parent=1 // pred_check
      _
    $region63: #{tpu_custom_call.1} parent=1 // pred_check_branch
      %963 = sbr.rel (0) target = $region65
    $region64: #{tpu_custom_call.1} parent=1 // pred_region
      %964 = dma.done [#allocation6], 512
    $region65: #{tpu_custom_call.1} parent=1 // pred_fallthru
      _
    // Predicated region
    $region66: #{tpu_custom_call.1} parent=1 // pred_check
      _
    $region67: #{tpu_custom_call.1} parent=1 // pred_check_branch
      %966 = sbr.rel (0) target = $region69
    $region68: #{tpu_custom_call.1} parent=1 // pred_region
      %967 = dma.done [#allocation15], 512
    $region69: #{tpu_custom_call.1} parent=1 // pred_fallthru
      _
    %968 = vsyncpa [#allocation5], 1
    %969 = vsyncpa [#allocation8], 1
    %970 = vsyncpa [#allocation11], 1
    %971 = vsyncpa [#allocation6], 1
    %972 = vsyncpa [#allocation15], 1

</llo_original>
